<compile_context>
chip_gen: v6e
topology: v6e:2x2x1
jax: 0.10.0
libtpu: 0.0.40
codegen_flags: <defaults>
</compile_context>

<pallas_src>
import functools

import numpy as np
import jax
import jax.numpy as jnp
from jax.experimental import pallas as pl
from jax.experimental.pallas import tpu as pltpu

BN_EPS = 0.001  # matches the PyTorch module


# -----------------------------------------------------------------------------
# Kernel
# -----------------------------------------------------------------------------
def ibottleneck_kernel(xp_ref, w1_ref, b1_ref, w2_ref, b2_ref, w3_ref, b3_ref,
                       mfirst_ref, mlast_ref, out_ref, y1pad_ref, *, H, W):
    HW = H * W
    off = W + 1                      # flat offset of pixel (0, 0) in padded buffers
    Cp = out_ref.shape[1]            # padded channel count
    Lpad = y1pad_ref.shape[1]        # padded flat length = HW + 3*W

    m_first = mfirst_ref[...]        # (1, HW): 0 at w == 0     (for dx = -1 taps)
    m_last = mlast_ref[...]          # (1, HW): 0 at w == W-1   (for dx = +1 taps)

    def conv3x3(load_window, w_ref, b_ref):
        # w_ref: (9, Co, Ci) folded tap weights, tap t = ky*3 + kx.
        co = w_ref.shape[1]
        acc = jnp.zeros((co, HW), jnp.float32)
        t = 0
        for dy in (-1, 0, 1):
            for dx in (-1, 0, 1):
                win = load_window(off + dy * W + dx)        # static lane slice
                if dx == 1:
                    win = win * m_last
                elif dx == -1:
                    win = win * m_first
                acc = acc + jnp.dot(w_ref[t], win,
                                    preferred_element_type=jnp.float32)
                t += 1
        return acc + b_ref[...]

    # ---- conv1: 3x3 (idims -> idims) + BN1 (folded) + ReLU -------------------
    y1 = jnp.maximum(
        conv3x3(lambda s: xp_ref[0, :, pl.ds(s, HW)], w1_ref, b1_ref), 0.0)

    # Stage y1 into the persistent row-padded scratch.  Only the small halo
    # slices are re-zeroed (interior is fully overwritten every step), which is
    # cheap and keeps the kernel correct under core-parallel batch splitting.
    y1pad_ref[:, pl.ds(0, off)] = jnp.zeros((Cp, off), jnp.float32)
    y1pad_ref[:, pl.ds(off + HW, Lpad - off - HW)] = jnp.zeros(
        (Cp, Lpad - off - HW), jnp.float32)
    y1pad_ref[:, pl.ds(off, HW)] = y1

    # ---- conv2a: grouped 3x3 (idims -> 6*idims, groups=idims) + BN2a ---------
    # (expressed as a dense matmul with a block-expanded, zero-filled weight)
    y2 = conv3x3(lambda s: y1pad_ref[:, pl.ds(s, HW)], w2_ref, b2_ref)

    # ---- conv2b: 1x1 (6*idims -> odims) + BN2b -------------------------------
    y3 = jnp.dot(w3_ref[...], y2, preferred_element_type=jnp.float32) + b3_ref[...]

    # ---- identity shortcut (stride == 1) + final ReLU ------------------------
    x_c = xp_ref[0, :, pl.ds(off, HW)]
    out_ref[0] = jnp.maximum(y3 + x_c, 0.0)


# -----------------------------------------------------------------------------
# Wrapper
# -----------------------------------------------------------------------------
def _round_up(v, m):
    return (v + m - 1) // m * m


def ibottleneck_forward(x_nchw, params):
    """Eval-mode forward of iBottleneckBlock(idims, odims, stride=1)."""
    N, C, H, W = x_nchw.shape
    mid = params['w2'].shape[0]          # 6 * idims
    Cout = params['w3'].shape[0]
    assert Cout == C, "stride=1 block uses an identity shortcut (odims == idims)"
    HW = H * W
    Cp = _round_up(C, 8)                 # padded in/out channels
    Cm = _round_up(mid, 8)               # padded mid channels
    L = HW + 3 * W                       # row-padded flat length
    OFF = W + 1
    f32 = jnp.float32

    # ---- fold eval-mode BatchNorm into conv weights / per-channel shifts ----
    def fold(wc, stats):
        g, b, m, v = stats
        s = g * jax.lax.rsqrt(v + BN_EPS)
        return wc * s.reshape(-1, 1, 1, 1), (b - m * s)

    w1f, b1 = fold(params['w1'], params['bn1'])          # (C, C, 3, 3)
    w2f, b2 = fold(params['w2'], params['bn2'])          # (mid, 1, 3, 3)
    w3f, b3 = fold(params['w3'], params['bn3'])          # (C, mid, 1, 1)

    # conv1 taps: (9, Cp, Cp), tap t = ky*3 + kx
    w1_taps = jnp.zeros((9, Cp, Cp), f32).at[:, :C, :C].set(
        jnp.transpose(w1f, (2, 3, 0, 1)).reshape(9, C, C))

    # conv2a grouped (groups=C): expand to block-sparse dense taps (9, Cm, Cp)
    per_tap = jnp.transpose(w2f[:, 0], (1, 2, 0)).reshape(9, mid)       # (9, mid)
    sel = jax.nn.one_hot(jnp.arange(mid) // (mid // C), Cp, dtype=f32)  # (mid, Cp)
    w2_taps = jnp.zeros((9, Cm, Cp), f32).at[:, :mid, :].set(
        per_tap[:, :, None] * sel[None])

    # conv2b 1x1: (Cp, Cm)
    w3_mat = jnp.zeros((Cp, Cm), f32).at[:C, :mid].set(w3f[:, :, 0, 0])

    b1p = jnp.zeros((Cp, 1), f32).at[:C, 0].set(b1)
    b2p = jnp.zeros((Cm, 1), f32).at[:mid, 0].set(b2)
    b3p = jnp.zeros((Cp, 1), f32).at[:C, 0].set(b3)

    # column-boundary masks (kill the taps that would read across a row)
    col = jnp.arange(HW, dtype=jnp.int32) % W
    mask_first = (col != 0).astype(f32).reshape(1, HW)      # for dx = -1
    mask_last = (col != W - 1).astype(f32).reshape(1, HW)   # for dx = +1

    # channels-first, row-padded flat input: (N, Cp, L); no transpose needed.
    xp = jnp.pad(x_nchw.astype(f32).reshape(N, C, HW),
                 ((0, 0), (0, Cp - C), (OFF, L - HW - OFF)))

    def rep(shape):
        nd = len(shape)
        return pl.BlockSpec(shape, lambda n: (0,) * nd)

    grid_spec = pltpu.PrefetchScalarGridSpec(
        num_scalar_prefetch=0,
        grid=(N,),
        in_specs=[
            pl.BlockSpec((1, Cp, L), lambda n: (n, 0, 0)),
            rep((9, Cp, Cp)), rep((Cp, 1)),
            rep((9, Cm, Cp)), rep((Cm, 1)),
            rep((Cp, Cm)), rep((Cp, 1)),
            rep((1, HW)), rep((1, HW)),
        ],
        out_specs=pl.BlockSpec((1, Cp, HW), lambda n: (n, 0, 0)),
        scratch_shapes=[pltpu.VMEM((Cp, L), f32)],   # row-padded y1 buffer
    )

    out = pl.pallas_call(
        functools.partial(ibottleneck_kernel, H=H, W=W),
        out_shape=jax.ShapeDtypeStruct((N, Cp, HW), f32),
        grid_spec=grid_spec,
        compiler_params=pltpu.CompilerParams(
            dimension_semantics=("parallel",)),      # batch across TCs on v7x
    )(xp, w1_taps, b1p, w2_taps, b2p, w3_mat, b3p, mask_first, mask_last)

    # drop padded channels; reshape is free (layout already NCHW-flat).
    return out[:, :Cout, :].reshape(N, Cout, H, W)


# -----------------------------------------------------------------------------
# Parameters + pure-JAX reference (eval-mode)
# -----------------------------------------------------------------------------
def init_params(key, idims, odims):
    assert odims == idims
    ks = jax.random.split(key, 15)

    def w(k, shape, s=0.1):
        return (s * jax.random.normal(k, shape)).astype(jnp.float32)

    def bn(k1, k2, k3, k4, c):
        gamma = (1.0 + 0.1 * jax.random.normal(k1, (c,))).astype(jnp.float32)
        beta = (0.1 * jax.random.normal(k2, (c,))).astype(jnp.float32)
        mean = (0.1 * jax.random.normal(k3, (c,))).astype(jnp.float32)
        var = (1.0 + 0.1 * jax.random.uniform(k4, (c,))).astype(jnp.float32)
        return (gamma, beta, mean, var)

    mid = 6 * idims
    return dict(
        w1=w(ks[0], (idims, idims, 3, 3)),
        bn1=bn(ks[1], ks[2], ks[3], ks[4], idims),
        w2=w(ks[5], (mid, 1, 3, 3)),            # grouped: (out, in/groups=1, 3, 3)
        bn2=bn(ks[6], ks[7], ks[8], ks[9], mid),
        w3=w(ks[10], (odims, mid, 1, 1)),
        bn3=bn(ks[11], ks[12], ks[13], ks[14], odims),
    )


def _conv2d(x, w, groups=1, padding=1):
    return jax.lax.conv_general_dilated(
        x, w, window_strides=(1, 1),
        padding=((padding, padding), (padding, padding)),
        dimension_numbers=('NCHW', 'OIHW', 'NCHW'),
        feature_group_count=groups)


def ibottleneck_reference(x, params):
    def bn(v, stats):
        g, b, m, var = stats
        s = g * jax.lax.rsqrt(var + BN_EPS)
        return v * s[None, :, None, None] + (b - m * s)[None, :, None, None]

    idims = params['w1'].shape[0]
    y = jax.nn.relu(bn(_conv2d(x, params['w1']), params['bn1']))
    y = bn(_conv2d(y, params['w2'], groups=idims), params['bn2'])
    y = bn(_conv2d(y, params['w3'], padding=0), params['bn3'])
    return jax.nn.relu(y + x)     # stride == 1 -> identity shortcut


# -----------------------------------------------------------------------------
# Demo
# -----------------------------------------------------------------------------
if __name__ == "__main__":
    key = jax.random.PRNGKey(0)
    kx, kp = jax.random.split(key)

    N, C, H, W = 2, 4, 16, 16
    x = jax.random.normal(kx, (N, C, H, W), dtype=jnp.float32)
    params = init_params(kp, C, C)

    out = ibottleneck_forward(x, params)
    jax.block_until_ready(out)

    ref = ibottleneck_reference(x, params)
    np.testing.assert_allclose(np.asarray(out), np.asarray(ref),
                               rtol=2e-2, atol=2e-2)

    assert out.shape == (N, C, H, W)
    assert bool(jnp.isfinite(out).all())
    print("KERNEL_OK")
</pallas_src>

<mosaic_0001>
module attributes {stable_mosaic.version = 11 : i64} {
  func.func @ibottleneck_kernel(%arg0: i32, %arg1: memref<1x8x304xf32, #tpu.memory_space<vmem>>, %arg2: memref<9x8x8xf32, #tpu.memory_space<vmem>>, %arg3: memref<8x1xf32, #tpu.memory_space<vmem>>, %arg4: memref<9x24x8xf32, #tpu.memory_space<vmem>>, %arg5: memref<24x1xf32, #tpu.memory_space<vmem>>, %arg6: memref<8x24xf32, #tpu.memory_space<vmem>>, %arg7: memref<8x1xf32, #tpu.memory_space<vmem>>, %arg8: memref<1x256xf32, #tpu.memory_space<vmem>>, %arg9: memref<1x256xf32, #tpu.memory_space<vmem>>, %arg10: memref<1x8x256xf32, #tpu.memory_space<vmem>>, %arg11: memref<8x304xf32, #tpu.memory_space<vmem>>) attributes {dimension_semantics = [#tpu.dimension_semantics<parallel>], iteration_bounds = array<i64: 2>, scalar_prefetch = 0 : i64, scratch_operands = 1 : i64, tpu.core_type = #tpu.core_type<tc>, window_params = [{transform_indices = @transform_0, window_bounds = array<i64: 1, 8, 304>}, {pipeline_mode = #tpu.pipeline_mode<synchronous>, transform_indices = @transform_1, window_bounds = array<i64: 9, 8, 8>}, {pipeline_mode = #tpu.pipeline_mode<synchronous>, transform_indices = @transform_2, window_bounds = array<i64: 8, 1>}, {pipeline_mode = #tpu.pipeline_mode<synchronous>, transform_indices = @transform_3, window_bounds = array<i64: 9, 24, 8>}, {pipeline_mode = #tpu.pipeline_mode<synchronous>, transform_indices = @transform_4, window_bounds = array<i64: 24, 1>}, {pipeline_mode = #tpu.pipeline_mode<synchronous>, transform_indices = @transform_5, window_bounds = array<i64: 8, 24>}, {pipeline_mode = #tpu.pipeline_mode<synchronous>, transform_indices = @transform_6, window_bounds = array<i64: 8, 1>}, {pipeline_mode = #tpu.pipeline_mode<synchronous>, transform_indices = @transform_7, window_bounds = array<i64: 1, 256>}, {pipeline_mode = #tpu.pipeline_mode<synchronous>, transform_indices = @transform_8, window_bounds = array<i64: 1, 256>}, {transform_indices = @transform_9, window_bounds = array<i64: 1, 8, 256>}]} {
    %c0 = arith.constant 0 : index
    %c0_0 = arith.constant 0 : index
    %0 = vector.load %arg8[%c0, %c0_0] : memref<1x256xf32, #tpu.memory_space<vmem>>, vector<1x256xf32>
    %c0_1 = arith.constant 0 : index
    %c0_2 = arith.constant 0 : index
    %1 = vector.load %arg9[%c0_1, %c0_2] : memref<1x256xf32, #tpu.memory_space<vmem>>, vector<1x256xf32>
    %cst = arith.constant 0.000000e+00 : f32
    %2 = vector.broadcast %cst : f32 to vector<8x256xf32>
    %c0_3 = arith.constant 0 : index
    %c0_4 = arith.constant 0 : index
    %c0_5 = arith.constant 0 : index
    %3 = vector.load %arg1[%c0_3, %c0_4, %c0_5] : memref<1x8x304xf32, #tpu.memory_space<vmem>>, vector<1x8x256xf32>
    %4 = vector.shape_cast %3 : vector<1x8x256xf32> to vector<8x256xf32>
    %5 = vector.broadcast %0 : vector<1x256xf32> to vector<8x256xf32>
    %6 = arith.mulf %4, %5 : vector<8x256xf32>
    %c0_6 = arith.constant 0 : index
    %c0_7 = arith.constant 0 : index
    %c0_8 = arith.constant 0 : index
    %7 = vector.load %arg2[%c0_6, %c0_7, %c0_8] : memref<9x8x8xf32, #tpu.memory_space<vmem>>, vector<1x8x8xf32>
    %8 = vector.shape_cast %7 : vector<1x8x8xf32> to vector<8x8xf32>
    %cst_9 = arith.constant dense<0.000000e+00> : vector<8x256xf32>
    %9 = tpu.matmul %8, %6, %cst_9 {dimension_numbers = #tpu.dot_dimension_numbers<[1], [0], [0], [1], [0, 0, 1, 1], [], []>} : vector<8x8xf32>, vector<8x256xf32>, vector<8x256xf32> -> vector<8x256xf32>
    %10 = arith.addf %2, %9 : vector<8x256xf32>
    %c0_10 = arith.constant 0 : index
    %c0_11 = arith.constant 0 : index
    %c1 = arith.constant 1 : index
    %11 = vector.load %arg1[%c0_10, %c0_11, %c1] : memref<1x8x304xf32, #tpu.memory_space<vmem>>, vector<1x8x256xf32>
    %12 = vector.shape_cast %11 : vector<1x8x256xf32> to vector<8x256xf32>
    %c1_12 = arith.constant 1 : index
    %c0_13 = arith.constant 0 : index
    %c0_14 = arith.constant 0 : index
    %13 = vector.load %arg2[%c1_12, %c0_13, %c0_14] : memref<9x8x8xf32, #tpu.memory_space<vmem>>, vector<1x8x8xf32>
    %14 = vector.shape_cast %13 : vector<1x8x8xf32> to vector<8x8xf32>
    %cst_15 = arith.constant dense<0.000000e+00> : vector<8x256xf32>
    %15 = tpu.matmul %14, %12, %cst_15 {dimension_numbers = #tpu.dot_dimension_numbers<[1], [0], [0], [1], [0, 0, 1, 1], [], []>} : vector<8x8xf32>, vector<8x256xf32>, vector<8x256xf32> -> vector<8x256xf32>
    %16 = arith.addf %10, %15 : vector<8x256xf32>
    %c0_16 = arith.constant 0 : index
    %c0_17 = arith.constant 0 : index
    %c2 = arith.constant 2 : index
    %17 = vector.load %arg1[%c0_16, %c0_17, %c2] : memref<1x8x304xf32, #tpu.memory_space<vmem>>, vector<1x8x256xf32>
    %18 = vector.shape_cast %17 : vector<1x8x256xf32> to vector<8x256xf32>
    %19 = vector.broadcast %1 : vector<1x256xf32> to vector<8x256xf32>
    %20 = arith.mulf %18, %19 : vector<8x256xf32>
    %c2_18 = arith.constant 2 : index
    %c0_19 = arith.constant 0 : index
    %c0_20 = arith.constant 0 : index
    %21 = vector.load %arg2[%c2_18, %c0_19, %c0_20] : memref<9x8x8xf32, #tpu.memory_space<vmem>>, vector<1x8x8xf32>
    %22 = vector.shape_cast %21 : vector<1x8x8xf32> to vector<8x8xf32>
    %cst_21 = arith.constant dense<0.000000e+00> : vector<8x256xf32>
    %23 = tpu.matmul %22, %20, %cst_21 {dimension_numbers = #tpu.dot_dimension_numbers<[1], [0], [0], [1], [0, 0, 1, 1], [], []>} : vector<8x8xf32>, vector<8x256xf32>, vector<8x256xf32> -> vector<8x256xf32>
    %24 = arith.addf %16, %23 : vector<8x256xf32>
    %c0_22 = arith.constant 0 : index
    %c0_23 = arith.constant 0 : index
    %c16 = arith.constant 16 : index
    %25 = vector.load %arg1[%c0_22, %c0_23, %c16] : memref<1x8x304xf32, #tpu.memory_space<vmem>>, vector<1x8x256xf32>
    %26 = vector.shape_cast %25 : vector<1x8x256xf32> to vector<8x256xf32>
    %27 = vector.broadcast %0 : vector<1x256xf32> to vector<8x256xf32>
    %28 = arith.mulf %26, %27 : vector<8x256xf32>
    %c3 = arith.constant 3 : index
    %c0_24 = arith.constant 0 : index
    %c0_25 = arith.constant 0 : index
    %29 = vector.load %arg2[%c3, %c0_24, %c0_25] : memref<9x8x8xf32, #tpu.memory_space<vmem>>, vector<1x8x8xf32>
    %30 = vector.shape_cast %29 : vector<1x8x8xf32> to vector<8x8xf32>
    %cst_26 = arith.constant dense<0.000000e+00> : vector<8x256xf32>
    %31 = tpu.matmul %30, %28, %cst_26 {dimension_numbers = #tpu.dot_dimension_numbers<[1], [0], [0], [1], [0, 0, 1, 1], [], []>} : vector<8x8xf32>, vector<8x256xf32>, vector<8x256xf32> -> vector<8x256xf32>
    %32 = arith.addf %24, %31 : vector<8x256xf32>
    %c0_27 = arith.constant 0 : index
    %c0_28 = arith.constant 0 : index
    %c17 = arith.constant 17 : index
    %33 = vector.load %arg1[%c0_27, %c0_28, %c17] : memref<1x8x304xf32, #tpu.memory_space<vmem>>, vector<1x8x256xf32>
    %34 = vector.shape_cast %33 : vector<1x8x256xf32> to vector<8x256xf32>
    %c4 = arith.constant 4 : index
    %c0_29 = arith.constant 0 : index
    %c0_30 = arith.constant 0 : index
    %35 = vector.load %arg2[%c4, %c0_29, %c0_30] : memref<9x8x8xf32, #tpu.memory_space<vmem>>, vector<1x8x8xf32>
    %36 = vector.shape_cast %35 : vector<1x8x8xf32> to vector<8x8xf32>
    %cst_31 = arith.constant dense<0.000000e+00> : vector<8x256xf32>
    %37 = tpu.matmul %36, %34, %cst_31 {dimension_numbers = #tpu.dot_dimension_numbers<[1], [0], [0], [1], [0, 0, 1, 1], [], []>} : vector<8x8xf32>, vector<8x256xf32>, vector<8x256xf32> -> vector<8x256xf32>
    %38 = arith.addf %32, %37 : vector<8x256xf32>
    %c0_32 = arith.constant 0 : index
    %c0_33 = arith.constant 0 : index
    %c18 = arith.constant 18 : index
    %39 = vector.load %arg1[%c0_32, %c0_33, %c18] : memref<1x8x304xf32, #tpu.memory_space<vmem>>, vector<1x8x256xf32>
    %40 = vector.shape_cast %39 : vector<1x8x256xf32> to vector<8x256xf32>
    %41 = vector.broadcast %1 : vector<1x256xf32> to vector<8x256xf32>
    %42 = arith.mulf %40, %41 : vector<8x256xf32>
    %c5 = arith.constant 5 : index
    %c0_34 = arith.constant 0 : index
    %c0_35 = arith.constant 0 : index
    %43 = vector.load %arg2[%c5, %c0_34, %c0_35] : memref<9x8x8xf32, #tpu.memory_space<vmem>>, vector<1x8x8xf32>
    %44 = vector.shape_cast %43 : vector<1x8x8xf32> to vector<8x8xf32>
    %cst_36 = arith.constant dense<0.000000e+00> : vector<8x256xf32>
    %45 = tpu.matmul %44, %42, %cst_36 {dimension_numbers = #tpu.dot_dimension_numbers<[1], [0], [0], [1], [0, 0, 1, 1], [], []>} : vector<8x8xf32>, vector<8x256xf32>, vector<8x256xf32> -> vector<8x256xf32>
    %46 = arith.addf %38, %45 : vector<8x256xf32>
    %c0_37 = arith.constant 0 : index
    %c0_38 = arith.constant 0 : index
    %c32 = arith.constant 32 : index
    %47 = vector.load %arg1[%c0_37, %c0_38, %c32] : memref<1x8x304xf32, #tpu.memory_space<vmem>>, vector<1x8x256xf32>
    %48 = vector.shape_cast %47 : vector<1x8x256xf32> to vector<8x256xf32>
    %49 = vector.broadcast %0 : vector<1x256xf32> to vector<8x256xf32>
    %50 = arith.mulf %48, %49 : vector<8x256xf32>
    %c6 = arith.constant 6 : index
    %c0_39 = arith.constant 0 : index
    %c0_40 = arith.constant 0 : index
    %51 = vector.load %arg2[%c6, %c0_39, %c0_40] : memref<9x8x8xf32, #tpu.memory_space<vmem>>, vector<1x8x8xf32>
    %52 = vector.shape_cast %51 : vector<1x8x8xf32> to vector<8x8xf32>
    %cst_41 = arith.constant dense<0.000000e+00> : vector<8x256xf32>
    %53 = tpu.matmul %52, %50, %cst_41 {dimension_numbers = #tpu.dot_dimension_numbers<[1], [0], [0], [1], [0, 0, 1, 1], [], []>} : vector<8x8xf32>, vector<8x256xf32>, vector<8x256xf32> -> vector<8x256xf32>
    %54 = arith.addf %46, %53 : vector<8x256xf32>
    %c0_42 = arith.constant 0 : index
    %c0_43 = arith.constant 0 : index
    %c33 = arith.constant 33 : index
    %55 = vector.load %arg1[%c0_42, %c0_43, %c33] : memref<1x8x304xf32, #tpu.memory_space<vmem>>, vector<1x8x256xf32>
    %56 = vector.shape_cast %55 : vector<1x8x256xf32> to vector<8x256xf32>
    %c7 = arith.constant 7 : index
    %c0_44 = arith.constant 0 : index
    %c0_45 = arith.constant 0 : index
    %57 = vector.load %arg2[%c7, %c0_44, %c0_45] : memref<9x8x8xf32, #tpu.memory_space<vmem>>, vector<1x8x8xf32>
    %58 = vector.shape_cast %57 : vector<1x8x8xf32> to vector<8x8xf32>
    %cst_46 = arith.constant dense<0.000000e+00> : vector<8x256xf32>
    %59 = tpu.matmul %58, %56, %cst_46 {dimension_numbers = #tpu.dot_dimension_numbers<[1], [0], [0], [1], [0, 0, 1, 1], [], []>} : vector<8x8xf32>, vector<8x256xf32>, vector<8x256xf32> -> vector<8x256xf32>
    %60 = arith.addf %54, %59 : vector<8x256xf32>
    %c0_47 = arith.constant 0 : index
    %c0_48 = arith.constant 0 : index
    %c34 = arith.constant 34 : index
    %61 = vector.load %arg1[%c0_47, %c0_48, %c34] : memref<1x8x304xf32, #tpu.memory_space<vmem>>, vector<1x8x256xf32>
    %62 = vector.shape_cast %61 : vector<1x8x256xf32> to vector<8x256xf32>
    %63 = vector.broadcast %1 : vector<1x256xf32> to vector<8x256xf32>
    %64 = arith.mulf %62, %63 : vector<8x256xf32>
    %c8 = arith.constant 8 : index
    %c0_49 = arith.constant 0 : index
    %c0_50 = arith.constant 0 : index
    %65 = vector.load %arg2[%c8, %c0_49, %c0_50] : memref<9x8x8xf32, #tpu.memory_space<vmem>>, vector<1x8x8xf32>
    %66 = vector.shape_cast %65 : vector<1x8x8xf32> to vector<8x8xf32>
    %cst_51 = arith.constant dense<0.000000e+00> : vector<8x256xf32>
    %67 = tpu.matmul %66, %64, %cst_51 {dimension_numbers = #tpu.dot_dimension_numbers<[1], [0], [0], [1], [0, 0, 1, 1], [], []>} : vector<8x8xf32>, vector<8x256xf32>, vector<8x256xf32> -> vector<8x256xf32>
    %68 = arith.addf %60, %67 : vector<8x256xf32>
    %c0_52 = arith.constant 0 : index
    %c0_53 = arith.constant 0 : index
    %69 = vector.load %arg3[%c0_52, %c0_53] : memref<8x1xf32, #tpu.memory_space<vmem>>, vector<8x1xf32>
    %70 = vector.broadcast %69 : vector<8x1xf32> to vector<8x256xf32>
    %71 = arith.addf %68, %70 : vector<8x256xf32>
    %cst_54 = arith.constant 0.000000e+00 : f32
    %72 = vector.broadcast %cst_54 : f32 to vector<8x256xf32>
    %73 = arith.maximumf %71, %72 : vector<8x256xf32>
    %cst_55 = arith.constant 0.000000e+00 : f32
    %74 = vector.broadcast %cst_55 : f32 to vector<8x17xf32>
    %c0_56 = arith.constant 0 : index
    %c0_57 = arith.constant 0 : index
    %75 = vector.load %arg11[%c0_56, %c0_57] : memref<8x304xf32, #tpu.memory_space<vmem>>, vector<8x17xf32>
    tpu.vector_store %arg11[%c0_56, %c0_57], %74 {strides = array<i32>} : memref<8x304xf32, #tpu.memory_space<vmem>>, vector<8x17xf32>,
    %cst_58 = arith.constant 0.000000e+00 : f32
    %76 = vector.broadcast %cst_58 : f32 to vector<8x31xf32>
    %c0_59 = arith.constant 0 : index
    %c273 = arith.constant 273 : index
    %77 = vector.load %arg11[%c0_59, %c273] : memref<8x304xf32, #tpu.memory_space<vmem>>, vector<8x31xf32>
    tpu.vector_store %arg11[%c0_59, %c273], %76 {strides = array<i32>} : memref<8x304xf32, #tpu.memory_space<vmem>>, vector<8x31xf32>,
    %c0_60 = arith.constant 0 : index
    %c17_61 = arith.constant 17 : index
    %78 = vector.load %arg11[%c0_60, %c17_61] : memref<8x304xf32, #tpu.memory_space<vmem>>, vector<8x256xf32>
    tpu.vector_store %arg11[%c0_60, %c17_61], %73 {strides = array<i32>} : memref<8x304xf32, #tpu.memory_space<vmem>>, vector<8x256xf32>,
    %cst_62 = arith.constant 0.000000e+00 : f32
    %79 = vector.broadcast %cst_62 : f32 to vector<24x256xf32>
    %c0_63 = arith.constant 0 : index
    %c0_64 = arith.constant 0 : index
    %80 = vector.load %arg11[%c0_63, %c0_64] : memref<8x304xf32, #tpu.memory_space<vmem>>, vector<8x256xf32>
    %81 = vector.broadcast %0 : vector<1x256xf32> to vector<8x256xf32>
    %82 = arith.mulf %80, %81 : vector<8x256xf32>
    %c0_65 = arith.constant 0 : index
    %c0_66 = arith.constant 0 : index
    %c0_67 = arith.constant 0 : index
    %83 = vector.load %arg4[%c0_65, %c0_66, %c0_67] : memref<9x24x8xf32, #tpu.memory_space<vmem>>, vector<1x24x8xf32>
    %84 = vector.shape_cast %83 : vector<1x24x8xf32> to vector<24x8xf32>
    %cst_68 = arith.constant dense<0.000000e+00> : vector<24x256xf32>
    %85 = tpu.matmul %84, %82, %cst_68 {dimension_numbers = #tpu.dot_dimension_numbers<[1], [0], [0], [1], [0, 0, 1, 1], [], []>} : vector<24x8xf32>, vector<8x256xf32>, vector<24x256xf32> -> vector<24x256xf32>
    %86 = arith.addf %79, %85 : vector<24x256xf32>
    %c0_69 = arith.constant 0 : index
    %c1_70 = arith.constant 1 : index
    %87 = vector.load %arg11[%c0_69, %c1_70] : memref<8x304xf32, #tpu.memory_space<vmem>>, vector<8x256xf32>
    %c1_71 = arith.constant 1 : index
    %c0_72 = arith.constant 0 : index
    %c0_73 = arith.constant 0 : index
    %88 = vector.load %arg4[%c1_71, %c0_72, %c0_73] : memref<9x24x8xf32, #tpu.memory_space<vmem>>, vector<1x24x8xf32>
    %89 = vector.shape_cast %88 : vector<1x24x8xf32> to vector<24x8xf32>
    %cst_74 = arith.constant dense<0.000000e+00> : vector<24x256xf32>
    %90 = tpu.matmul %89, %87, %cst_74 {dimension_numbers = #tpu.dot_dimension_numbers<[1], [0], [0], [1], [0, 0, 1, 1], [], []>} : vector<24x8xf32>, vector<8x256xf32>, vector<24x256xf32> -> vector<24x256xf32>
    %91 = arith.addf %86, %90 : vector<24x256xf32>
    %c0_75 = arith.constant 0 : index
    %c2_76 = arith.constant 2 : index
    %92 = vector.load %arg11[%c0_75, %c2_76] : memref<8x304xf32, #tpu.memory_space<vmem>>, vector<8x256xf32>
    %93 = vector.broadcast %1 : vector<1x256xf32> to vector<8x256xf32>
    %94 = arith.mulf %92, %93 : vector<8x256xf32>
    %c2_77 = arith.constant 2 : index
    %c0_78 = arith.constant 0 : index
    %c0_79 = arith.constant 0 : index
    %95 = vector.load %arg4[%c2_77, %c0_78, %c0_79] : memref<9x24x8xf32, #tpu.memory_space<vmem>>, vector<1x24x8xf32>
    %96 = vector.shape_cast %95 : vector<1x24x8xf32> to vector<24x8xf32>
    %cst_80 = arith.constant dense<0.000000e+00> : vector<24x256xf32>
    %97 = tpu.matmul %96, %94, %cst_80 {dimension_numbers = #tpu.dot_dimension_numbers<[1], [0], [0], [1], [0, 0, 1, 1], [], []>} : vector<24x8xf32>, vector<8x256xf32>, vector<24x256xf32> -> vector<24x256xf32>
    %98 = arith.addf %91, %97 : vector<24x256xf32>
    %c0_81 = arith.constant 0 : index
    %c16_82 = arith.constant 16 : index
    %99 = vector.load %arg11[%c0_81, %c16_82] : memref<8x304xf32, #tpu.memory_space<vmem>>, vector<8x256xf32>
    %100 = vector.broadcast %0 : vector<1x256xf32> to vector<8x256xf32>
    %101 = arith.mulf %99, %100 : vector<8x256xf32>
    %c3_83 = arith.constant 3 : index
    %c0_84 = arith.constant 0 : index
    %c0_85 = arith.constant 0 : index
    %102 = vector.load %arg4[%c3_83, %c0_84, %c0_85] : memref<9x24x8xf32, #tpu.memory_space<vmem>>, vector<1x24x8xf32>
    %103 = vector.shape_cast %102 : vector<1x24x8xf32> to vector<24x8xf32>
    %cst_86 = arith.constant dense<0.000000e+00> : vector<24x256xf32>
    %104 = tpu.matmul %103, %101, %cst_86 {dimension_numbers = #tpu.dot_dimension_numbers<[1], [0], [0], [1], [0, 0, 1, 1], [], []>} : vector<24x8xf32>, vector<8x256xf32>, vector<24x256xf32> -> vector<24x256xf32>
    %105 = arith.addf %98, %104 : vector<24x256xf32>
    %c0_87 = arith.constant 0 : index
    %c17_88 = arith.constant 17 : index
    %106 = vector.load %arg11[%c0_87, %c17_88] : memref<8x304xf32, #tpu.memory_space<vmem>>, vector<8x256xf32>
    %c4_89 = arith.constant 4 : index
    %c0_90 = arith.constant 0 : index
    %c0_91 = arith.constant 0 : index
    %107 = vector.load %arg4[%c4_89, %c0_90, %c0_91] : memref<9x24x8xf32, #tpu.memory_space<vmem>>, vector<1x24x8xf32>
    %108 = vector.shape_cast %107 : vector<1x24x8xf32> to vector<24x8xf32>
    %cst_92 = arith.constant dense<0.000000e+00> : vector<24x256xf32>
    %109 = tpu.matmul %108, %106, %cst_92 {dimension_numbers = #tpu.dot_dimension_numbers<[1], [0], [0], [1], [0, 0, 1, 1], [], []>} : vector<24x8xf32>, vector<8x256xf32>, vector<24x256xf32> -> vector<24x256xf32>
    %110 = arith.addf %105, %109 : vector<24x256xf32>
    %c0_93 = arith.constant 0 : index
    %c18_94 = arith.constant 18 : index
    %111 = vector.load %arg11[%c0_93, %c18_94] : memref<8x304xf32, #tpu.memory_space<vmem>>, vector<8x256xf32>
    %112 = vector.broadcast %1 : vector<1x256xf32> to vector<8x256xf32>
    %113 = arith.mulf %111, %112 : vector<8x256xf32>
    %c5_95 = arith.constant 5 : index
    %c0_96 = arith.constant 0 : index
    %c0_97 = arith.constant 0 : index
    %114 = vector.load %arg4[%c5_95, %c0_96, %c0_97] : memref<9x24x8xf32, #tpu.memory_space<vmem>>, vector<1x24x8xf32>
    %115 = vector.shape_cast %114 : vector<1x24x8xf32> to vector<24x8xf32>
    %cst_98 = arith.constant dense<0.000000e+00> : vector<24x256xf32>
    %116 = tpu.matmul %115, %113, %cst_98 {dimension_numbers = #tpu.dot_dimension_numbers<[1], [0], [0], [1], [0, 0, 1, 1], [], []>} : vector<24x8xf32>, vector<8x256xf32>, vector<24x256xf32> -> vector<24x256xf32>
    %117 = arith.addf %110, %116 : vector<24x256xf32>
    %c0_99 = arith.constant 0 : index
    %c32_100 = arith.constant 32 : index
    %118 = vector.load %arg11[%c0_99, %c32_100] : memref<8x304xf32, #tpu.memory_space<vmem>>, vector<8x256xf32>
    %119 = vector.broadcast %0 : vector<1x256xf32> to vector<8x256xf32>
    %120 = arith.mulf %118, %119 : vector<8x256xf32>
    %c6_101 = arith.constant 6 : index
    %c0_102 = arith.constant 0 : index
    %c0_103 = arith.constant 0 : index
    %121 = vector.load %arg4[%c6_101, %c0_102, %c0_103] : memref<9x24x8xf32, #tpu.memory_space<vmem>>, vector<1x24x8xf32>
    %122 = vector.shape_cast %121 : vector<1x24x8xf32> to vector<24x8xf32>
    %cst_104 = arith.constant dense<0.000000e+00> : vector<24x256xf32>
    %123 = tpu.matmul %122, %120, %cst_104 {dimension_numbers = #tpu.dot_dimension_numbers<[1], [0], [0], [1], [0, 0, 1, 1], [], []>} : vector<24x8xf32>, vector<8x256xf32>, vector<24x256xf32> -> vector<24x256xf32>
    %124 = arith.addf %117, %123 : vector<24x256xf32>
    %c0_105 = arith.constant 0 : index
    %c33_106 = arith.constant 33 : index
    %125 = vector.load %arg11[%c0_105, %c33_106] : memref<8x304xf32, #tpu.memory_space<vmem>>, vector<8x256xf32>
    %c7_107 = arith.constant 7 : index
    %c0_108 = arith.constant 0 : index
    %c0_109 = arith.constant 0 : index
    %126 = vector.load %arg4[%c7_107, %c0_108, %c0_109] : memref<9x24x8xf32, #tpu.memory_space<vmem>>, vector<1x24x8xf32>
    %127 = vector.shape_cast %126 : vector<1x24x8xf32> to vector<24x8xf32>
    %cst_110 = arith.constant dense<0.000000e+00> : vector<24x256xf32>
    %128 = tpu.matmul %127, %125, %cst_110 {dimension_numbers = #tpu.dot_dimension_numbers<[1], [0], [0], [1], [0, 0, 1, 1], [], []>} : vector<24x8xf32>, vector<8x256xf32>, vector<24x256xf32> -> vector<24x256xf32>
    %129 = arith.addf %124, %128 : vector<24x256xf32>
    %c0_111 = arith.constant 0 : index
    %c34_112 = arith.constant 34 : index
    %130 = vector.load %arg11[%c0_111, %c34_112] : memref<8x304xf32, #tpu.memory_space<vmem>>, vector<8x256xf32>
    %131 = vector.broadcast %1 : vector<1x256xf32> to vector<8x256xf32>
    %132 = arith.mulf %130, %131 : vector<8x256xf32>
    %c8_113 = arith.constant 8 : index
    %c0_114 = arith.constant 0 : index
    %c0_115 = arith.constant 0 : index
    %133 = vector.load %arg4[%c8_113, %c0_114, %c0_115] : memref<9x24x8xf32, #tpu.memory_space<vmem>>, vector<1x24x8xf32>
    %134 = vector.shape_cast %133 : vector<1x24x8xf32> to vector<24x8xf32>
    %cst_116 = arith.constant dense<0.000000e+00> : vector<24x256xf32>
    %135 = tpu.matmul %134, %132, %cst_116 {dimension_numbers = #tpu.dot_dimension_numbers<[1], [0], [0], [1], [0, 0, 1, 1], [], []>} : vector<24x8xf32>, vector<8x256xf32>, vector<24x256xf32> -> vector<24x256xf32>
    %136 = arith.addf %129, %135 : vector<24x256xf32>
    %c0_117 = arith.constant 0 : index
    %c0_118 = arith.constant 0 : index
    %137 = vector.load %arg5[%c0_117, %c0_118] : memref<24x1xf32, #tpu.memory_space<vmem>>, vector<24x1xf32>
    %138 = vector.broadcast %137 : vector<24x1xf32> to vector<24x256xf32>
    %139 = arith.addf %136, %138 : vector<24x256xf32>
    %c0_119 = arith.constant 0 : index
    %c0_120 = arith.constant 0 : index
    %140 = vector.load %arg6[%c0_119, %c0_120] : memref<8x24xf32, #tpu.memory_space<vmem>>, vector<8x24xf32>
    %cst_121 = arith.constant dense<0.000000e+00> : vector<8x256xf32>
    %141 = tpu.matmul %140, %139, %cst_121 {dimension_numbers = #tpu.dot_dimension_numbers<[1], [0], [0], [1], [0, 0, 1, 1], [], []>} : vector<8x24xf32>, vector<24x256xf32>, vector<8x256xf32> -> vector<8x256xf32>
    %c0_122 = arith.constant 0 : index
    %c0_123 = arith.constant 0 : index
    %142 = vector.load %arg7[%c0_122, %c0_123] : memref<8x1xf32, #tpu.memory_space<vmem>>, vector<8x1xf32>
    %143 = vector.broadcast %142 : vector<8x1xf32> to vector<8x256xf32>
    %144 = arith.addf %141, %143 : vector<8x256xf32>
    %c0_124 = arith.constant 0 : index
    %c0_125 = arith.constant 0 : index
    %c17_126 = arith.constant 17 : index
    %145 = vector.load %arg1[%c0_124, %c0_125, %c17_126] : memref<1x8x304xf32, #tpu.memory_space<vmem>>, vector<1x8x256xf32>
    %146 = vector.shape_cast %145 : vector<1x8x256xf32> to vector<8x256xf32>
    %147 = arith.addf %144, %146 : vector<8x256xf32>
    %cst_127 = arith.constant 0.000000e+00 : f32
    %148 = vector.broadcast %cst_127 : f32 to vector<8x256xf32>
    %149 = arith.maximumf %147, %148 : vector<8x256xf32>
    %c0_128 = arith.constant 0 : index
    %c0_129 = arith.constant 0 : index
    %c0_130 = arith.constant 0 : index
    %150 = vector.load %arg10[%c0_128, %c0_129, %c0_130] : memref<1x8x256xf32, #tpu.memory_space<vmem>>, vector<1x8x256xf32>
    %151 = vector.shape_cast %150 : vector<1x8x256xf32> to vector<8x256xf32>
    %152 = vector.shape_cast %149 : vector<8x256xf32> to vector<1x8x256xf32>
    tpu.vector_store %arg10[%c0_128, %c0_129, %c0_130], %152 {strides = array<i32>} : memref<1x8x256xf32, #tpu.memory_space<vmem>>, vector<1x8x256xf32>,
    return
  }
  func.func @transform_0(%arg0: i32) -> (i32, i32, i32) {
    %c0_i32 = arith.constant 0 : i32
    %c0_i32_0 = arith.constant 0 : i32
    %c0_i32_1 = arith.constant 0 : i32
    return %arg0, %c0_i32, %c0_i32_0 : i32, i32, i32
  }
  func.func @transform_1(%arg0: i32) -> (i32, i32, i32) {
    %c0_i32 = arith.constant 0 : i32
    %c0_i32_0 = arith.constant 0 : i32
    %c0_i32_1 = arith.constant 0 : i32
    %c0_i32_2 = arith.constant 0 : i32
    return %c0_i32, %c0_i32_0, %c0_i32_1 : i32, i32, i32
  }
  func.func @transform_2(%arg0: i32) -> (i32, i32) {
    %c0_i32 = arith.constant 0 : i32
    %c0_i32_0 = arith.constant 0 : i32
    %c0_i32_1 = arith.constant 0 : i32
    return %c0_i32, %c0_i32_0 : i32, i32
  }
  func.func @transform_3(%arg0: i32) -> (i32, i32, i32) {
    %c0_i32 = arith.constant 0 : i32
    %c0_i32_0 = arith.constant 0 : i32
    %c0_i32_1 = arith.constant 0 : i32
    %c0_i32_2 = arith.constant 0 : i32
    return %c0_i32, %c0_i32_0, %c0_i32_1 : i32, i32, i32
  }
  func.func @transform_4(%arg0: i32) -> (i32, i32) {
    %c0_i32 = arith.constant 0 : i32
    %c0_i32_0 = arith.constant 0 : i32
    %c0_i32_1 = arith.constant 0 : i32
    return %c0_i32, %c0_i32_0 : i32, i32
  }
  func.func @transform_5(%arg0: i32) -> (i32, i32) {
    %c0_i32 = arith.constant 0 : i32
    %c0_i32_0 = arith.constant 0 : i32
    %c0_i32_1 = arith.constant 0 : i32
    return %c0_i32, %c0_i32_0 : i32, i32
  }
  func.func @transform_6(%arg0: i32) -> (i32, i32) {
    %c0_i32 = arith.constant 0 : i32
    %c0_i32_0 = arith.constant 0 : i32
    %c0_i32_1 = arith.constant 0 : i32
    return %c0_i32, %c0_i32_0 : i32, i32
  }
  func.func @transform_7(%arg0: i32) -> (i32, i32) {
    %c0_i32 = arith.constant 0 : i32
    %c0_i32_0 = arith.constant 0 : i32
    %c0_i32_1 = arith.constant 0 : i32
    return %c0_i32, %c0_i32_0 : i32, i32
  }
  func.func @transform_8(%arg0: i32) -> (i32, i32) {
    %c0_i32 = arith.constant 0 : i32
    %c0_i32_0 = arith.constant 0 : i32
    %c0_i32_1 = arith.constant 0 : i32
    return %c0_i32, %c0_i32_0 : i32, i32
  }
  func.func @transform_9(%arg0: i32) -> (i32, i32, i32) {
    %c0_i32 = arith.constant 0 : i32
    %c0_i32_0 = arith.constant 0 : i32
    %c0_i32_1 = arith.constant 0 : i32
    return %arg0, %c0_i32, %c0_i32_0 : i32, i32, i32
  }
}

</mosaic_0001>

<llo_original>
// kernel: tpu_custom_call.1
$region0: #{tpu_custom_call.1}
  #allocation0 [shape = 'u32[]', space=smem, size = 0x4, offset = 0x4, fixed_abs, tag = 'smem constant byte address 0x4 - core index']
  #allocation1 [shape = 'u32[144,128]{1,0:T(1,128)}', space=vmem, size = 0x12000, scoped, tag = 'internal scratch']
  #allocation2 [shape = 'f32[8,304]{1,0:T(8,128)}', space=vmem, size = 0x3000, scoped, tag = 'scratch operand']
  %s0 = inlined_call_operand.vmem [shape: f32[2,8,304], index: 0, kind: input, shape index: {}]
  %s1 = inlined_call_operand.vmem [shape: f32[9,8,8], index: 1, kind: input, shape index: {}]
  %s2 = inlined_call_operand.vmem [shape: f32[8,1], index: 2, kind: input, shape index: {}]
  %s3 = inlined_call_operand.vmem [shape: f32[9,24,8], index: 3, kind: input, shape index: {}]
  %s4 = inlined_call_operand.vmem [shape: f32[24,1], index: 4, kind: input, shape index: {}]
  %s5 = inlined_call_operand.vmem [shape: f32[8,24], index: 5, kind: input, shape index: {}]
  %s6 = inlined_call_operand.vmem [shape: f32[8,1], index: 6, kind: input, shape index: {}]
  %s7 = inlined_call_operand.vmem [shape: f32[1,256], index: 7, kind: input, shape index: {}]
  %s8 = inlined_call_operand.vmem [shape: f32[1,256], index: 8, kind: input, shape index: {}]
  %s9 = inlined_call_operand.hbm [shape: f32[2,8,256], index: 9, kind: output, shape index: {}]
  %s10 = sld [smem:[#allocation0]]
  $region69: #{tpu_custom_call.1} parent=0
    _
  %s12 = ssub.s32 1, %s10
  %s13 = scalar_select 0, %s12, %s10
  $region1: #{tpu_custom_call.1} parent=0
    #allocation3 [shape = 'u8[16384]{0}', space=vmem, size = 0x4000, scoped, tag = 'output window, operand 0']
    #allocation4 [shape = 's32[2]{0}', space=sflag, size = 0x8, scoped, tag = 'scoped memory for tpu_custom_call.1']
    %14 = vsyncpa [#allocation4], 0
    %s15 = scalar_lea.sflag [#allocation4], 1
    %16 = vsyncpa %s15, 0
    loop: start=0, step=1, limit=4
    $region2: #{tpu_custom_call.1} parent=1 // loop_pre_header
      _
    $region3: #{tpu_custom_call.1} parent=1 // loop_header
      %s18 = sphi 0, %s22
      %p19 = scmp.ge.s32.totalorder %s18, 4
      %s28 = sphi 0, %s30
      %s31 = sphi 0, %s28
      %s32 = sphi 0, %s31
      %s48 = sphi 0, %s32
      %s52 = sphi 0, %s52
      %s54 = sphi 0, %s52
      %s55 = sphi 0, %s54
      %s69 = sphi 0, %s55
      %s73 = sphi 0, %s73
      %s75 = sphi 0, %s73
      %s76 = sphi 0, %s75
      %s90 = sphi 0, %s76
      %s94 = sphi 0, %s94
      %s96 = sphi 0, %s94
      %s97 = sphi 0, %s96
      %s111 = sphi 0, %s97
      %s115 = sphi 0, %s115
      %s117 = sphi 0, %s115
      %s118 = sphi 0, %s117
      %s132 = sphi 0, %s118
      %s136 = sphi 0, %s136
      %s138 = sphi 0, %s136
      %s139 = sphi 0, %s138
      %s153 = sphi 0, %s139
      %s157 = sphi 0, %s157
      %s159 = sphi 0, %s157
      %s160 = sphi 0, %s159
      %s174 = sphi 0, %s160
      %s178 = sphi 0, %s178
      %s180 = sphi 0, %s178
      %s181 = sphi 0, %s180
      %s195 = sphi 0, %s181
      %s199 = sphi 0, %s199
      %s201 = sphi 0, %s199
      %s202 = sphi 0, %s201
      %s216 = sphi 0, %s202
      %s222 = sphi 0, %s224
      %s225 = sphi 0, %s222
      %s226 = sphi 0, %s225
      %s242 = sphi 0, %s226
    $region4: #{tpu_custom_call.1} parent=1 // loop_header_branch
      %21 = sbr.rel (%p19) target = $region8
    $region5: #{tpu_custom_call.1} parent=1 // loop_body
      %s23 = ssub.s32 %s18, 1
      %s24 = ssub.s32 %s18, 2
      %s25 = sadd.s32 %s18, 1
      %s26 = ssub.s32 %s18, %s25
      %p27 = scmp.eq.s32.totalorder %s26, 0
      %s29 = sadd.s32 %s28, 1
      %s30 = scalar_select %p27, %s28, %s29
      %p33 = pneg %p27
      %p34 = scmp.eq.s32.totalorder %s18, 1
      %p35 = por %p33, %p34
      %p36 = scmp.ne.s32.totalorder %s28, %s31
      %p37 = scmp.eq.s32.totalorder %s18, 0
      %p38 = por %p36, %p37
      %p39 = scmp.ne.s32.totalorder %s28, %s31
      %p40 = scmp.eq.s32.totalorder %s23, 1
      %p41 = por %p39, %p40
      %p42 = scmp.ne.s32.totalorder %s31, %s32
      %p43 = scmp.eq.s32.totalorder %s23, 0
      %p44 = por %p42, %p43
      %p45 = scmp.ne.s32.totalorder %s31, %s32
      %p46 = scmp.eq.s32.totalorder %s24, 1
      %p47 = por %p45, %p46
      %p49 = scmp.ne.s32.totalorder %s32, %s48
      %p50 = scmp.eq.s32.totalorder %s24, 0
      %p51 = por %p49, %p50
      %s53 = sadd.s32 %s52, 1
      %p56 = scmp.eq.s32.totalorder %s18, 1
      %p57 = scmp.ne.s32.totalorder %s52, %s54
      %p58 = scmp.eq.s32.totalorder %s18, 0
      %p59 = por %p57, %p58
      %p60 = scmp.ne.s32.totalorder %s52, %s54
      %p61 = scmp.eq.s32.totalorder %s23, 1
      %p62 = por %p60, %p61
      %p63 = scmp.ne.s32.totalorder %s54, %s55
      %p64 = scmp.eq.s32.totalorder %s23, 0
      %p65 = por %p63, %p64
      %p66 = scmp.ne.s32.totalorder %s54, %s55
      %p67 = scmp.eq.s32.totalorder %s24, 1
      %p68 = por %p66, %p67
      %p70 = scmp.ne.s32.totalorder %s55, %s69
      %p71 = scmp.eq.s32.totalorder %s24, 0
      %p72 = por %p70, %p71
      %s74 = sadd.s32 %s73, 1
      %p77 = scmp.eq.s32.totalorder %s18, 1
      %p78 = scmp.ne.s32.totalorder %s73, %s75
      %p79 = scmp.eq.s32.totalorder %s18, 0
      %p80 = por %p78, %p79
      %p81 = scmp.ne.s32.totalorder %s73, %s75
      %p82 = scmp.eq.s32.totalorder %s23, 1
      %p83 = por %p81, %p82
      %p84 = scmp.ne.s32.totalorder %s75, %s76
      %p85 = scmp.eq.s32.totalorder %s23, 0
      %p86 = por %p84, %p85
      %p87 = scmp.ne.s32.totalorder %s75, %s76
      %p88 = scmp.eq.s32.totalorder %s24, 1
      %p89 = por %p87, %p88
      %p91 = scmp.ne.s32.totalorder %s76, %s90
      %p92 = scmp.eq.s32.totalorder %s24, 0
      %p93 = por %p91, %p92
      %s95 = sadd.s32 %s94, 1
      %p98 = scmp.eq.s32.totalorder %s18, 1
      %p99 = scmp.ne.s32.totalorder %s94, %s96
      %p100 = scmp.eq.s32.totalorder %s18, 0
      %p101 = por %p99, %p100
      %p102 = scmp.ne.s32.totalorder %s94, %s96
      %p103 = scmp.eq.s32.totalorder %s23, 1
      %p104 = por %p102, %p103
      %p105 = scmp.ne.s32.totalorder %s96, %s97
      %p106 = scmp.eq.s32.totalorder %s23, 0
      %p107 = por %p105, %p106
      %p108 = scmp.ne.s32.totalorder %s96, %s97
      %p109 = scmp.eq.s32.totalorder %s24, 1
      %p110 = por %p108, %p109
      %p112 = scmp.ne.s32.totalorder %s97, %s111
      %p113 = scmp.eq.s32.totalorder %s24, 0
      %p114 = por %p112, %p113
      %s116 = sadd.s32 %s115, 1
      %p119 = scmp.eq.s32.totalorder %s18, 1
      %p120 = scmp.ne.s32.totalorder %s115, %s117
      %p121 = scmp.eq.s32.totalorder %s18, 0
      %p122 = por %p120, %p121
      %p123 = scmp.ne.s32.totalorder %s115, %s117
      %p124 = scmp.eq.s32.totalorder %s23, 1
      %p125 = por %p123, %p124
      %p126 = scmp.ne.s32.totalorder %s117, %s118
      %p127 = scmp.eq.s32.totalorder %s23, 0
      %p128 = por %p126, %p127
      %p129 = scmp.ne.s32.totalorder %s117, %s118
      %p130 = scmp.eq.s32.totalorder %s24, 1
      %p131 = por %p129, %p130
      %p133 = scmp.ne.s32.totalorder %s118, %s132
      %p134 = scmp.eq.s32.totalorder %s24, 0
      %p135 = por %p133, %p134
      %s137 = sadd.s32 %s136, 1
      %p140 = scmp.eq.s32.totalorder %s18, 1
      %p141 = scmp.ne.s32.totalorder %s136, %s138
      %p142 = scmp.eq.s32.totalorder %s18, 0
      %p143 = por %p141, %p142
      %p144 = scmp.ne.s32.totalorder %s136, %s138
      %p145 = scmp.eq.s32.totalorder %s23, 1
      %p146 = por %p144, %p145
      %p147 = scmp.ne.s32.totalorder %s138, %s139
      %p148 = scmp.eq.s32.totalorder %s23, 0
      %p149 = por %p147, %p148
      %p150 = scmp.ne.s32.totalorder %s138, %s139
      %p151 = scmp.eq.s32.totalorder %s24, 1
      %p152 = por %p150, %p151
      %p154 = scmp.ne.s32.totalorder %s139, %s153
      %p155 = scmp.eq.s32.totalorder %s24, 0
      %p156 = por %p154, %p155
      %s158 = sadd.s32 %s157, 1
      %p161 = scmp.eq.s32.totalorder %s18, 1
      %p162 = scmp.ne.s32.totalorder %s157, %s159
      %p163 = scmp.eq.s32.totalorder %s18, 0
      %p164 = por %p162, %p163
      %p165 = scmp.ne.s32.totalorder %s157, %s159
      %p166 = scmp.eq.s32.totalorder %s23, 1
      %p167 = por %p165, %p166
      %p168 = scmp.ne.s32.totalorder %s159, %s160
      %p169 = scmp.eq.s32.totalorder %s23, 0
      %p170 = por %p168, %p169
      %p171 = scmp.ne.s32.totalorder %s159, %s160
      %p172 = scmp.eq.s32.totalorder %s24, 1
      %p173 = por %p171, %p172
      %p175 = scmp.ne.s32.totalorder %s160, %s174
      %p176 = scmp.eq.s32.totalorder %s24, 0
      %p177 = por %p175, %p176
      %s179 = sadd.s32 %s178, 1
      %p182 = scmp.eq.s32.totalorder %s18, 1
      %p183 = scmp.ne.s32.totalorder %s178, %s180
      %p184 = scmp.eq.s32.totalorder %s18, 0
      %p185 = por %p183, %p184
      %p186 = scmp.ne.s32.totalorder %s178, %s180
      %p187 = scmp.eq.s32.totalorder %s23, 1
      %p188 = por %p186, %p187
      %p189 = scmp.ne.s32.totalorder %s180, %s181
      %p190 = scmp.eq.s32.totalorder %s23, 0
      %p191 = por %p189, %p190
      %p192 = scmp.ne.s32.totalorder %s180, %s181
      %p193 = scmp.eq.s32.totalorder %s24, 1
      %p194 = por %p192, %p193
      %p196 = scmp.ne.s32.totalorder %s181, %s195
      %p197 = scmp.eq.s32.totalorder %s24, 0
      %p198 = por %p196, %p197
      %s200 = sadd.s32 %s199, 1
      %p203 = scmp.eq.s32.totalorder %s18, 1
      %p204 = scmp.ne.s32.totalorder %s199, %s201
      %p205 = scmp.eq.s32.totalorder %s18, 0
      %p206 = por %p204, %p205
      %p207 = scmp.ne.s32.totalorder %s199, %s201
      %p208 = scmp.eq.s32.totalorder %s23, 1
      %p209 = por %p207, %p208
      %p210 = scmp.ne.s32.totalorder %s201, %s202
      %p211 = scmp.eq.s32.totalorder %s23, 0
      %p212 = por %p210, %p211
      %p213 = scmp.ne.s32.totalorder %s201, %s202
      %p214 = scmp.eq.s32.totalorder %s24, 1
      %p215 = por %p213, %p214
      %p217 = scmp.ne.s32.totalorder %s202, %s216
      %p218 = scmp.eq.s32.totalorder %s24, 0
      %p219 = por %p217, %p218
      %s220 = ssub.s32 %s18, %s25
      %p221 = scmp.eq.s32.totalorder %s220, 0
      %s223 = sadd.s32 %s222, 1
      %s224 = scalar_select %p221, %s222, %s223
      %p227 = pneg %p221
      %p228 = scmp.eq.s32.totalorder %s18, 1
      %p229 = por %p227, %p228
      %p230 = scmp.ne.s32.totalorder %s222, %s225
      %p231 = scmp.eq.s32.totalorder %s18, 0
      %p232 = por %p230, %p231
      %p233 = scmp.ne.s32.totalorder %s222, %s225
      %p234 = scmp.eq.s32.totalorder %s23, 1
      %p235 = por %p233, %p234
      %p236 = scmp.ne.s32.totalorder %s225, %s226
      %p237 = scmp.eq.s32.totalorder %s23, 0
      %p238 = por %p236, %p237
      %p239 = scmp.ne.s32.totalorder %s225, %s226
      %p240 = scmp.eq.s32.totalorder %s24, 1
      %p241 = por %p239, %p240
      %p243 = scmp.ne.s32.totalorder %s226, %s242
      %p244 = scmp.eq.s32.totalorder %s24, 0
      %p245 = por %p243, %p244
      %p246 = scmp.le.s32.totalorder 1, %s18
      %p247 = scmp.lt.s32.totalorder %s18, 3
      %p248 = pnand %p246, %p247
      %p249 = pneg %p248
      // Predicated region
      $region9: #{tpu_custom_call.1} parent=5 // pred_check
        _
      $region10: #{tpu_custom_call.1} parent=5 // pred_check_branch
        %251 = sbr.rel (%p248) target = $region12
      $region11: #{tpu_custom_call.1} parent=5 // pred_region
        %s252 = ssub.s32 %s18, 1
        // Predicated region
        $region13: #{tpu_custom_call.1} parent=11 // pred_check
          %p253 = pneg %p65
        $region14: #{tpu_custom_call.1} parent=11 // pred_check_branch
          %255 = sbr.rel (%p253) target = $region16
        $region15: #{tpu_custom_call.1} parent=11 // pred_region
          _
        $region16: #{tpu_custom_call.1} parent=11 // pred_fallthru
          _
        // Predicated region
        $region17: #{tpu_custom_call.1} parent=11 // pred_check
          %p256 = pneg %p86
        $region18: #{tpu_custom_call.1} parent=11 // pred_check_branch
          %258 = sbr.rel (%p256) target = $region20
        $region19: #{tpu_custom_call.1} parent=11 // pred_region
          _
        $region20: #{tpu_custom_call.1} parent=11 // pred_fallthru
          _
        // Predicated region
        $region21: #{tpu_custom_call.1} parent=11 // pred_check
          %p259 = pneg %p107
        $region22: #{tpu_custom_call.1} parent=11 // pred_check_branch
          %261 = sbr.rel (%p259) target = $region24
        $region23: #{tpu_custom_call.1} parent=11 // pred_region
          _
        $region24: #{tpu_custom_call.1} parent=11 // pred_fallthru
          _
        // Predicated region
        $region25: #{tpu_custom_call.1} parent=11 // pred_check
          %p262 = pneg %p128
        $region26: #{tpu_custom_call.1} parent=11 // pred_check_branch
          %264 = sbr.rel (%p262) target = $region28
        $region27: #{tpu_custom_call.1} parent=11 // pred_region
          _
        $region28: #{tpu_custom_call.1} parent=11 // pred_fallthru
          _
        // Predicated region
        $region29: #{tpu_custom_call.1} parent=11 // pred_check
          %p265 = pneg %p149
        $region30: #{tpu_custom_call.1} parent=11 // pred_check_branch
          %267 = sbr.rel (%p265) target = $region32
        $region31: #{tpu_custom_call.1} parent=11 // pred_region
          _
        $region32: #{tpu_custom_call.1} parent=11 // pred_fallthru
          _
        // Predicated region
        $region33: #{tpu_custom_call.1} parent=11 // pred_check
          %p268 = pneg %p170
        $region34: #{tpu_custom_call.1} parent=11 // pred_check_branch
          %270 = sbr.rel (%p268) target = $region36
        $region35: #{tpu_custom_call.1} parent=11 // pred_region
          _
        $region36: #{tpu_custom_call.1} parent=11 // pred_fallthru
          _
        // Predicated region
        $region37: #{tpu_custom_call.1} parent=11 // pred_check
          %p271 = pneg %p191
        $region38: #{tpu_custom_call.1} parent=11 // pred_check_branch
          %273 = sbr.rel (%p271) target = $region40
        $region39: #{tpu_custom_call.1} parent=11 // pred_region
          _
        $region40: #{tpu_custom_call.1} parent=11 // pred_fallthru
          _
        // Predicated region
        $region41: #{tpu_custom_call.1} parent=11 // pred_check
          %p274 = pneg %p212
        $region42: #{tpu_custom_call.1} parent=11 // pred_check_branch
          %276 = sbr.rel (%p274) target = $region44
        $region43: #{tpu_custom_call.1} parent=11 // pred_region
          _
        $region44: #{tpu_custom_call.1} parent=11 // pred_fallthru
          _
      $region12: #{tpu_custom_call.1} parent=5 // pred_fallthru
        _
      %p277 = scmp.lt.s32.totalorder %s18, 2
      // Predicated region
      $region45: #{tpu_custom_call.1} parent=5 // pred_check
        %p278 = pneg %p277
      $region46: #{tpu_custom_call.1} parent=5 // pred_check_branch
        %280 = sbr.rel (%p278) target = $region48
      $region47: #{tpu_custom_call.1} parent=5 // pred_region
        // Predicated region
        $region49: #{tpu_custom_call.1} parent=47 // pred_check
          %p281 = pneg %p38
        $region50: #{tpu_custom_call.1} parent=47 // pred_check_branch
          %283 = sbr.rel (%p281) target = $region52
        $region51: #{tpu_custom_call.1} parent=47 // pred_region
          %p284 = scmp.lt.s32.totalorder %s18, 1
          %s285 = scalar_select %p284, %s18, 1
          %s286 = smul.addr %s285, 3
          %s287 = smul.addr %s286, 8
          %s288 = scalar_lea.vmem %s0, %s287
        $region52: #{tpu_custom_call.1} parent=47 // pred_fallthru
          _
      $region48: #{tpu_custom_call.1} parent=5 // pred_fallthru
        _
      %p289 = scmp.le.s32.totalorder 1, %s18
      %p290 = scmp.lt.s32.totalorder %s18, 3
      %p291 = pnand %p289, %p290
      %p292 = pneg %p291
      // Predicated region
      $region53: #{tpu_custom_call.1} parent=5 // pred_check
        _
      $region54: #{tpu_custom_call.1} parent=5 // pred_check_branch
        %294 = sbr.rel (%p291) target = $region56
      $region55: #{tpu_custom_call.1} parent=5 // pred_region
        %s295 = ssub.s32 %s18, 1
        %p296 = scmp.lt.s32.totalorder %s23, 1
        %s297 = scalar_select %p296, %s23, 1
        %s298 = smul.addr %s297, 3
        %s299 = smul.addr %s298, 8
        %s300 = scalar_lea.vmem %s0, %s299
        %p301 = pneg %p44
        %p302 = pneg %p41
        %p303 = pneg %p65
        %p304 = pneg %p62
        %p305 = pneg %p86
        %p306 = pneg %p83
        %p307 = pneg %p107
        %p308 = pneg %p104
        %p309 = pneg %p128
        %p310 = pneg %p125
        %p311 = pneg %p149
        %p312 = pneg %p146
        %p313 = pneg %p170
        %p314 = pneg %p167
        %p315 = pneg %p191
        %p316 = pneg %p188
        %p317 = pneg %p212
        %p318 = pneg %p209
        %p319 = pneg %p238
        %p320 = pneg %p235
        %s321 = sand.u32 %s225, 1
        %s322 = scalar_lea.sflag [#allocation4], %s321
        %s323 = sand.u32 %s225, 1
        %s324 = smul.addr %s323, 16
        %s325 = scalar_lea.vmem [#allocation3], %s324
        %p326 = scmp.lt.s32.totalorder %s23, 1
        %s327 = scalar_select %p326, %s23, 1
        %s328 = smul.addr %s327, 3
        %s329 = smul.addr %s328, 8
        %s330 = scalar_lea.vmem %s0, %s329
        %v331 = vld [vmem:[%s7] sm:$0x3]
        %v332 = vld [vmem:[%s8] sm:$0x3]
        %v333 = vld [vmem:[%s330] sm:$0xff]
        %v334 = vld [vmem:[%s330 + $0x8] sm:$0xff]
        %v336 = vlaneseq
        %v337 = vshrl.u32 %v336, 7
        %v338 = vsub.s32 0, %v337
        %v339 = vrot.slane %v331, %v338
        %v340 = vlaneseq
        %v341 = vshrl.u32 %v340, 7
        %v342 = vsub.s32 1, %v341
        %v343 = vrot.slane %v331, %v342
        %v346 = vmul.f32 %v333, %v339
        %v347 = vmul.f32 %v334, %v343
        %v348 = vld [vmem:[%s1] sm:$0xff]
        %v349 = vld [vmem:[%s330 + $0x10] sm:$0xff]
        %s350 = scalar_lea.vmem %s1, 8
        %v351 = vld [vmem:[%s350] sm:$0xff]
        %355 = vrot.lane.b32.xlu0 %v333, 127
        %v356 = vpop.permute.xlu0 %355
        %357 = vrot.lane.b32.xlu0 %v334, 127
        %v358 = vpop.permute.xlu0 %357
        %359 = vrot.lane.b32.xlu0 %v349, 127
        %v360 = vpop.permute.xlu0 %359
        %vm361 = vcmask 1039360
        %v362 = vsel %vm361, %v356, %v358
        %v363 = vsel %vm361, %v358, %v360
        %vm366 = vcmask 64512
        %v368 = vsel %vm366, %v351, 0
        %370 = vmatprep.subr.mxu0 0.0
        %371 = vmatpush1.msra.mxu0 0.0
        %372 = vmatprep.subr.mxu0 0.0
        %373 = vmatpush1.msra.mxu0 0.0
        %374 = vmatprep.subr.mxu0 0.0
        %375 = vmatpush1.msra.mxu0 0.0
        %376 = vmatprep.subr.mxu0 0.0
        %377 = vmatpush1.msra.mxu0 0.0
        %378 = vmatprep.subr.mxu0 0.0
        %379 = vmatpush1.msra.mxu0 0.0
        %380 = vmatprep.subr.mxu0 0.0
        %381 = vmatpush1.msra.mxu0 0.0
        %382 = vmatprep.subr.mxu0 0.0
        %383 = vmatpush1.msra.mxu0 0.0
        %384 = vmatprep.subr.mxu0 0.0
        %385 = vmatpush1.msra.mxu0 0.0
        %386 = vmatprep.subr.mxu0 0.0
        %387 = vmatpush1.msra.mxu0 0.0
        %388 = vmatprep.subr.mxu0 0.0
        %389 = vmatpush1.msra.mxu0 0.0
        %390 = vmatprep.subr.mxu0 0.0
        %391 = vmatpush1.msra.mxu0 0.0
        %392 = vmatprep.subr.mxu0 0.0
        %393 = vmatpush1.msra.mxu0 0.0
        %394 = vmatprep.subr.mxu0 0.0
        %395 = vmatpush1.msra.mxu0 0.0
        %396 = vmatprep.subr.mxu0 0.0
        %397 = vmatpush1.msra.mxu0 0.0
        %398 = vmatprep.subr.mxu0 0.0
        %399 = vmatpush1.msra.mxu0 0.0
        %400 = vmatprep.subr.mxu0 %v363
        %401 = vmatpush1.msra.mxu0 %v362
        %402 = vmatprep.subr.mxu0 0.0
        %403 = vmatpush2.msra.mxu0 0.0
        %404 = vmatprep.subr.mxu0 0.0
        %405 = vmatpush2.msra.mxu0 0.0
        %406 = vmatprep.subr.mxu0 0.0
        %407 = vmatpush2.msra.mxu0 0.0
        %408 = vmatprep.subr.mxu0 0.0
        %409 = vmatpush2.msra.mxu0 0.0
        %410 = vmatprep.subr.mxu0 0.0
        %411 = vmatpush2.msra.mxu0 0.0
        %412 = vmatprep.subr.mxu0 0.0
        %413 = vmatpush2.msra.mxu0 0.0
        %414 = vmatprep.subr.mxu0 0.0
        %415 = vmatpush2.msra.mxu0 0.0
        %416 = vmatprep.subr.mxu0 0.0
        %417 = vmatpush2.msra.mxu0 0.0
        %418 = vmatprep.subr.mxu0 0.0
        %419 = vmatpush2.msra.mxu0 0.0
        %420 = vmatprep.subr.mxu0 0.0
        %421 = vmatpush2.msra.mxu0 0.0
        %422 = vmatprep.subr.mxu0 0.0
        %423 = vmatpush2.msra.mxu0 0.0
        %424 = vmatprep.subr.mxu0 0.0
        %425 = vmatpush2.msra.mxu0 0.0
        %426 = vmatprep.subr.mxu0 0.0
        %427 = vmatpush2.msra.mxu0 0.0
        %428 = vmatprep.subr.mxu0 0.0
        %429 = vmatpush2.msra.mxu0 0.0
        %430 = vmatprep.subr.mxu0 0.0
        %431 = vmatpush2.msra.mxu0 0.0
        %432 = vmatprep.subr.mxu0 0.0
        %433 = vmatpush2.msra.mxu0 0.0
        %434 = vmatprep.mubr.f32.mxu0 0.0
        %435 = vmatmul.mubr.f32.gmra.mxu0 %v368
        %v436 = vpop.f32.mrf.mxu0
        %v437 = vadd.f32 0.0, %v436
        %v438 = vpop.f32.mrf.mxu0
        %v439 = vadd.f32 0.0, %v438
        %440 = vdwg.mxu0
        %v442 = vsel %vm366, %v348, 0
        %444 = vmatprep.subr.mxu0 0.0
        %445 = vmatpush1.msra.mxu0 0.0
        %446 = vmatprep.subr.mxu0 0.0
        %447 = vmatpush1.msra.mxu0 0.0
        %448 = vmatprep.subr.mxu0 0.0
        %449 = vmatpush1.msra.mxu0 0.0
        %450 = vmatprep.subr.mxu0 0.0
        %451 = vmatpush1.msra.mxu0 0.0
        %452 = vmatprep.subr.mxu0 0.0
        %453 = vmatpush1.msra.mxu0 0.0
        %454 = vmatprep.subr.mxu0 0.0
        %455 = vmatpush1.msra.mxu0 0.0
        %456 = vmatprep.subr.mxu0 0.0
        %457 = vmatpush1.msra.mxu0 0.0
        %458 = vmatprep.subr.mxu0 0.0
        %459 = vmatpush1.msra.mxu0 0.0
        %460 = vmatprep.subr.mxu0 0.0
        %461 = vmatpush1.msra.mxu0 0.0
        %462 = vmatprep.subr.mxu0 0.0
        %463 = vmatpush1.msra.mxu0 0.0
        %464 = vmatprep.subr.mxu0 0.0
        %465 = vmatpush1.msra.mxu0 0.0
        %466 = vmatprep.subr.mxu0 0.0
        %467 = vmatpush1.msra.mxu0 0.0
        %468 = vmatprep.subr.mxu0 0.0
        %469 = vmatpush1.msra.mxu0 0.0
        %470 = vmatprep.subr.mxu0 0.0
        %471 = vmatpush1.msra.mxu0 0.0
        %472 = vmatprep.subr.mxu0 0.0
        %473 = vmatpush1.msra.mxu0 0.0
        %474 = vmatprep.subr.mxu0 %v347
        %475 = vmatpush1.msra.mxu0 %v346
        %476 = vmatprep.subr.mxu0 0.0
        %477 = vmatpush2.msra.mxu0 0.0
        %478 = vmatprep.subr.mxu0 0.0
        %479 = vmatpush2.msra.mxu0 0.0
        %480 = vmatprep.subr.mxu0 0.0
        %481 = vmatpush2.msra.mxu0 0.0
        %482 = vmatprep.subr.mxu0 0.0
        %483 = vmatpush2.msra.mxu0 0.0
        %484 = vmatprep.subr.mxu0 0.0
        %485 = vmatpush2.msra.mxu0 0.0
        %486 = vmatprep.subr.mxu0 0.0
        %487 = vmatpush2.msra.mxu0 0.0
        %488 = vmatprep.subr.mxu0 0.0
        %489 = vmatpush2.msra.mxu0 0.0
        %490 = vmatprep.subr.mxu0 0.0
        %491 = vmatpush2.msra.mxu0 0.0
        %492 = vmatprep.subr.mxu0 0.0
        %493 = vmatpush2.msra.mxu0 0.0
        %494 = vmatprep.subr.mxu0 0.0
        %495 = vmatpush2.msra.mxu0 0.0
        %496 = vmatprep.subr.mxu0 0.0
        %497 = vmatpush2.msra.mxu0 0.0
        %498 = vmatprep.subr.mxu0 0.0
        %499 = vmatpush2.msra.mxu0 0.0
        %500 = vmatprep.subr.mxu0 0.0
        %501 = vmatpush2.msra.mxu0 0.0
        %502 = vmatprep.subr.mxu0 0.0
        %503 = vmatpush2.msra.mxu0 0.0
        %504 = vmatprep.subr.mxu0 0.0
        %505 = vmatpush2.msra.mxu0 0.0
        %506 = vmatprep.subr.mxu0 0.0
        %507 = vmatpush2.msra.mxu0 0.0
        %508 = vmatprep.mubr.f32.mxu0 0.0
        %509 = vmatmul.mubr.f32.gmra.mxu0 %v442
        %v510 = vpop.f32.mrf.mxu0
        %v511 = vadd.f32 %v437, %v510
        %v512 = vpop.f32.mrf.mxu0
        %v513 = vadd.f32 %v439, %v512
        %514 = vdwg.mxu0
        %v516 = vlaneseq
        %v517 = vshrl.u32 %v516, 7
        %v518 = vsub.s32 0, %v517
        %v519 = vrot.slane %v332, %v518
        %v520 = vlaneseq
        %v521 = vshrl.u32 %v520, 7
        %v522 = vsub.s32 1, %v521
        %v523 = vrot.slane %v332, %v522
        %524 = vrot.lane.b32.xlu0 %v519, 2
        %v525 = vpop.permute.xlu0 %524
        %526 = vrot.lane.b32.xlu0 %v523, 2
        %v527 = vpop.permute.xlu0 %526
        %vm528 = vcmask 15360
        %v529 = vsel %vm528, %v525, %v527
        %v533 = vmul.f32 %v333, %v525
        %v534 = vmul.f32 %v334, %v529
        %v535 = vmul.f32 %v349, %v527
        %s536 = scalar_lea.vmem %s1, 16
        %v537 = vld [vmem:[%s536] sm:$0xff]
        %541 = vrot.lane.b32.xlu0 %v533, 126
        %v542 = vpop.permute.xlu0 %541
        %543 = vrot.lane.b32.xlu0 %v534, 126
        %v544 = vpop.permute.xlu0 %543
        %545 = vrot.lane.b32.xlu0 %v535, 126
        %v546 = vpop.permute.xlu0 %545
        %vm547 = vcmask 1031168
        %v548 = vsel %vm547, %v542, %v544
        %v549 = vsel %vm547, %v544, %v546
        %v553 = vsel %vm366, %v537, 0
        %555 = vmatprep.subr.mxu0 0.0
        %556 = vmatpush1.msra.mxu0 0.0
        %557 = vmatprep.subr.mxu0 0.0
        %558 = vmatpush1.msra.mxu0 0.0
        %559 = vmatprep.subr.mxu0 0.0
        %560 = vmatpush1.msra.mxu0 0.0
        %561 = vmatprep.subr.mxu0 0.0
        %562 = vmatpush1.msra.mxu0 0.0
        %563 = vmatprep.subr.mxu0 0.0
        %564 = vmatpush1.msra.mxu0 0.0
        %565 = vmatprep.subr.mxu0 0.0
        %566 = vmatpush1.msra.mxu0 0.0
        %567 = vmatprep.subr.mxu0 0.0
        %568 = vmatpush1.msra.mxu0 0.0
        %569 = vmatprep.subr.mxu0 0.0
        %570 = vmatpush1.msra.mxu0 0.0
        %571 = vmatprep.subr.mxu0 0.0
        %572 = vmatpush1.msra.mxu0 0.0
        %573 = vmatprep.subr.mxu0 0.0
        %574 = vmatpush1.msra.mxu0 0.0
        %575 = vmatprep.subr.mxu0 0.0
        %576 = vmatpush1.msra.mxu0 0.0
        %577 = vmatprep.subr.mxu0 0.0
        %578 = vmatpush1.msra.mxu0 0.0
        %579 = vmatprep.subr.mxu0 0.0
        %580 = vmatpush1.msra.mxu0 0.0
        %581 = vmatprep.subr.mxu0 0.0
        %582 = vmatpush1.msra.mxu0 0.0
        %583 = vmatprep.subr.mxu0 0.0
        %584 = vmatpush1.msra.mxu0 0.0
        %585 = vmatprep.subr.mxu0 %v549
        %586 = vmatpush1.msra.mxu0 %v548
        %587 = vmatprep.subr.mxu0 0.0
        %588 = vmatpush2.msra.mxu0 0.0
        %589 = vmatprep.subr.mxu0 0.0
        %590 = vmatpush2.msra.mxu0 0.0
        %591 = vmatprep.subr.mxu0 0.0
        %592 = vmatpush2.msra.mxu0 0.0
        %593 = vmatprep.subr.mxu0 0.0
        %594 = vmatpush2.msra.mxu0 0.0
        %595 = vmatprep.subr.mxu0 0.0
        %596 = vmatpush2.msra.mxu0 0.0
        %597 = vmatprep.subr.mxu0 0.0
        %598 = vmatpush2.msra.mxu0 0.0
        %599 = vmatprep.subr.mxu0 0.0
        %600 = vmatpush2.msra.mxu0 0.0
        %601 = vmatprep.subr.mxu0 0.0
        %602 = vmatpush2.msra.mxu0 0.0
        %603 = vmatprep.subr.mxu0 0.0
        %604 = vmatpush2.msra.mxu0 0.0
        %605 = vmatprep.subr.mxu0 0.0
        %606 = vmatpush2.msra.mxu0 0.0
        %607 = vmatprep.subr.mxu0 0.0
        %608 = vmatpush2.msra.mxu0 0.0
        %609 = vmatprep.subr.mxu0 0.0
        %610 = vmatpush2.msra.mxu0 0.0
        %611 = vmatprep.subr.mxu0 0.0
        %612 = vmatpush2.msra.mxu0 0.0
        %613 = vmatprep.subr.mxu0 0.0
        %614 = vmatpush2.msra.mxu0 0.0
        %615 = vmatprep.subr.mxu0 0.0
        %616 = vmatpush2.msra.mxu0 0.0
        %617 = vmatprep.subr.mxu0 0.0
        %618 = vmatpush2.msra.mxu0 0.0
        %619 = vmatprep.mubr.f32.mxu0 0.0
        %620 = vmatmul.mubr.f32.gmra.mxu0 %v553
        %v621 = vpop.f32.mrf.mxu0
        %v622 = vadd.f32 0.0, %v621
        %v623 = vpop.f32.mrf.mxu0
        %v624 = vadd.f32 0.0, %v623
        %625 = vdwg.mxu0
        %v626 = vadd.f32 %v511, %v622
        %v627 = vadd.f32 %v513, %v624
        %628 = vrot.lane.b32.xlu0 %v339, 16
        %v629 = vpop.permute.xlu0 %628
        %630 = vrot.lane.b32.xlu0 %v343, 16
        %v631 = vpop.permute.xlu0 %630
        %vm632 = vcmask 130048
        %v633 = vsel %vm632, %v629, %v631
        %v637 = vmul.f32 %v333, %v629
        %v638 = vmul.f32 %v334, %v633
        %v639 = vmul.f32 %v349, %v631
        %s640 = scalar_lea.vmem %s1, 24
        %v641 = vld [vmem:[%s640] sm:$0xff]
        %645 = vrot.lane.b32.xlu0 %v637, 112
        %v646 = vpop.permute.xlu0 %645
        %647 = vrot.lane.b32.xlu0 %v638, 112
        %v648 = vpop.permute.xlu0 %647
        %649 = vrot.lane.b32.xlu0 %v639, 112
        %v650 = vpop.permute.xlu0 %649
        %vm651 = vcmask 916480
        %v652 = vsel %vm651, %v646, %v648
        %v653 = vsel %vm651, %v648, %v650
        %v657 = vsel %vm366, %v641, 0
        %659 = vmatprep.subr.mxu0 0.0
        %660 = vmatpush1.msra.mxu0 0.0
        %661 = vmatprep.subr.mxu0 0.0
        %662 = vmatpush1.msra.mxu0 0.0
        %663 = vmatprep.subr.mxu0 0.0
        %664 = vmatpush1.msra.mxu0 0.0
        %665 = vmatprep.subr.mxu0 0.0
        %666 = vmatpush1.msra.mxu0 0.0
        %667 = vmatprep.subr.mxu0 0.0
        %668 = vmatpush1.msra.mxu0 0.0
        %669 = vmatprep.subr.mxu0 0.0
        %670 = vmatpush1.msra.mxu0 0.0
        %671 = vmatprep.subr.mxu0 0.0
        %672 = vmatpush1.msra.mxu0 0.0
        %673 = vmatprep.subr.mxu0 0.0
        %674 = vmatpush1.msra.mxu0 0.0
        %675 = vmatprep.subr.mxu0 0.0
        %676 = vmatpush1.msra.mxu0 0.0
        %677 = vmatprep.subr.mxu0 0.0
        %678 = vmatpush1.msra.mxu0 0.0
        %679 = vmatprep.subr.mxu0 0.0
        %680 = vmatpush1.msra.mxu0 0.0
        %681 = vmatprep.subr.mxu0 0.0
        %682 = vmatpush1.msra.mxu0 0.0
        %683 = vmatprep.subr.mxu0 0.0
        %684 = vmatpush1.msra.mxu0 0.0
        %685 = vmatprep.subr.mxu0 0.0
        %686 = vmatpush1.msra.mxu0 0.0
        %687 = vmatprep.subr.mxu0 0.0
        %688 = vmatpush1.msra.mxu0 0.0
        %689 = vmatprep.subr.mxu0 %v653
        %690 = vmatpush1.msra.mxu0 %v652
        %691 = vmatprep.subr.mxu0 0.0
        %692 = vmatpush2.msra.mxu0 0.0
        %693 = vmatprep.subr.mxu0 0.0
        %694 = vmatpush2.msra.mxu0 0.0
        %695 = vmatprep.subr.mxu0 0.0
        %696 = vmatpush2.msra.mxu0 0.0
        %697 = vmatprep.subr.mxu0 0.0
        %698 = vmatpush2.msra.mxu0 0.0
        %699 = vmatprep.subr.mxu0 0.0
        %700 = vmatpush2.msra.mxu0 0.0
        %701 = vmatprep.subr.mxu0 0.0
        %702 = vmatpush2.msra.mxu0 0.0
        %703 = vmatprep.subr.mxu0 0.0
        %704 = vmatpush2.msra.mxu0 0.0
        %705 = vmatprep.subr.mxu0 0.0
        %706 = vmatpush2.msra.mxu0 0.0
        %707 = vmatprep.subr.mxu0 0.0
        %708 = vmatpush2.msra.mxu0 0.0
        %709 = vmatprep.subr.mxu0 0.0
        %710 = vmatpush2.msra.mxu0 0.0
        %711 = vmatprep.subr.mxu0 0.0
        %712 = vmatpush2.msra.mxu0 0.0
        %713 = vmatprep.subr.mxu0 0.0
        %714 = vmatpush2.msra.mxu0 0.0
        %715 = vmatprep.subr.mxu0 0.0
        %716 = vmatpush2.msra.mxu0 0.0
        %717 = vmatprep.subr.mxu0 0.0
        %718 = vmatpush2.msra.mxu0 0.0
        %719 = vmatprep.subr.mxu0 0.0
        %720 = vmatpush2.msra.mxu0 0.0
        %721 = vmatprep.subr.mxu0 0.0
        %722 = vmatpush2.msra.mxu0 0.0
        %723 = vmatprep.mubr.f32.mxu0 0.0
        %724 = vmatmul.mubr.f32.gmra.mxu0 %v657
        %v725 = vpop.f32.mrf.mxu0
        %v726 = vadd.f32 0.0, %v725
        %v727 = vpop.f32.mrf.mxu0
        %v728 = vadd.f32 0.0, %v727
        %729 = vdwg.mxu0
        %v730 = vadd.f32 %v626, %v726
        %v731 = vadd.f32 %v627, %v728
        %s732 = scalar_lea.vmem %s1, 32
        %v733 = vld [vmem:[%s732] sm:$0xff]
        %734 = vrot.lane.b32.xlu0 %v333, 111
        %v735 = vpop.permute.xlu0 %734
        %736 = vrot.lane.b32.xlu0 %v334, 111
        %v737 = vpop.permute.xlu0 %736
        %738 = vrot.lane.b32.xlu0 %v349, 111
        %v739 = vpop.permute.xlu0 %738
        %vm740 = vcmask 908288
        %v741 = vsel %vm740, %v735, %v737
        %v742 = vsel %vm740, %v737, %v739
        %v746 = vsel %vm366, %v733, 0
        %748 = vmatprep.subr.mxu0 0.0
        %749 = vmatpush1.msra.mxu0 0.0
        %750 = vmatprep.subr.mxu0 0.0
        %751 = vmatpush1.msra.mxu0 0.0
        %752 = vmatprep.subr.mxu0 0.0
        %753 = vmatpush1.msra.mxu0 0.0
        %754 = vmatprep.subr.mxu0 0.0
        %755 = vmatpush1.msra.mxu0 0.0
        %756 = vmatprep.subr.mxu0 0.0
        %757 = vmatpush1.msra.mxu0 0.0
        %758 = vmatprep.subr.mxu0 0.0
        %759 = vmatpush1.msra.mxu0 0.0
        %760 = vmatprep.subr.mxu0 0.0
        %761 = vmatpush1.msra.mxu0 0.0
        %762 = vmatprep.subr.mxu0 0.0
        %763 = vmatpush1.msra.mxu0 0.0
        %764 = vmatprep.subr.mxu0 0.0
        %765 = vmatpush1.msra.mxu0 0.0
        %766 = vmatprep.subr.mxu0 0.0
        %767 = vmatpush1.msra.mxu0 0.0
        %768 = vmatprep.subr.mxu0 0.0
        %769 = vmatpush1.msra.mxu0 0.0
        %770 = vmatprep.subr.mxu0 0.0
        %771 = vmatpush1.msra.mxu0 0.0
        %772 = vmatprep.subr.mxu0 0.0
        %773 = vmatpush1.msra.mxu0 0.0
        %774 = vmatprep.subr.mxu0 0.0
        %775 = vmatpush1.msra.mxu0 0.0
        %776 = vmatprep.subr.mxu0 0.0
        %777 = vmatpush1.msra.mxu0 0.0
        %778 = vmatprep.subr.mxu0 %v742
        %779 = vmatpush1.msra.mxu0 %v741
        %780 = vmatprep.subr.mxu0 0.0
        %781 = vmatpush2.msra.mxu0 0.0
        %782 = vmatprep.subr.mxu0 0.0
        %783 = vmatpush2.msra.mxu0 0.0
        %784 = vmatprep.subr.mxu0 0.0
        %785 = vmatpush2.msra.mxu0 0.0
        %786 = vmatprep.subr.mxu0 0.0
        %787 = vmatpush2.msra.mxu0 0.0
        %788 = vmatprep.subr.mxu0 0.0
        %789 = vmatpush2.msra.mxu0 0.0
        %790 = vmatprep.subr.mxu0 0.0
        %791 = vmatpush2.msra.mxu0 0.0
        %792 = vmatprep.subr.mxu0 0.0
        %793 = vmatpush2.msra.mxu0 0.0
        %794 = vmatprep.subr.mxu0 0.0
        %795 = vmatpush2.msra.mxu0 0.0
        %796 = vmatprep.subr.mxu0 0.0
        %797 = vmatpush2.msra.mxu0 0.0
        %798 = vmatprep.subr.mxu0 0.0
        %799 = vmatpush2.msra.mxu0 0.0
        %800 = vmatprep.subr.mxu0 0.0
        %801 = vmatpush2.msra.mxu0 0.0
        %802 = vmatprep.subr.mxu0 0.0
        %803 = vmatpush2.msra.mxu0 0.0
        %804 = vmatprep.subr.mxu0 0.0
        %805 = vmatpush2.msra.mxu0 0.0
        %806 = vmatprep.subr.mxu0 0.0
        %807 = vmatpush2.msra.mxu0 0.0
        %808 = vmatprep.subr.mxu0 0.0
        %809 = vmatpush2.msra.mxu0 0.0
        %810 = vmatprep.subr.mxu0 0.0
        %811 = vmatpush2.msra.mxu0 0.0
        %812 = vmatprep.mubr.f32.mxu0 0.0
        %813 = vmatmul.mubr.f32.gmra.mxu0 %v746
        %v814 = vpop.f32.mrf.mxu0
        %v815 = vadd.f32 0.0, %v814
        %v816 = vpop.f32.mrf.mxu0
        %v817 = vadd.f32 0.0, %v816
        %818 = vdwg.mxu0
        %v819 = vadd.f32 %v730, %v815
        %v820 = vadd.f32 %v731, %v817
        %821 = vrot.lane.b32.xlu0 %v519, 18
        %v822 = vpop.permute.xlu0 %821
        %823 = vrot.lane.b32.xlu0 %v523, 18
        %v824 = vpop.permute.xlu0 %823
        %vm825 = vcmask 146432
        %v826 = vsel %vm825, %v822, %v824
        %v830 = vmul.f32 %v333, %v822
        %v831 = vmul.f32 %v334, %v826
        %v832 = vmul.f32 %v349, %v824
        %s833 = scalar_lea.vmem %s1, 40
        %v834 = vld [vmem:[%s833] sm:$0xff]
        %838 = vrot.lane.b32.xlu0 %v830, 110
        %v839 = vpop.permute.xlu0 %838
        %840 = vrot.lane.b32.xlu0 %v831, 110
        %v841 = vpop.permute.xlu0 %840
        %842 = vrot.lane.b32.xlu0 %v832, 110
        %v843 = vpop.permute.xlu0 %842
        %vm844 = vcmask 900096
        %v845 = vsel %vm844, %v839, %v841
        %v846 = vsel %vm844, %v841, %v843
        %v850 = vsel %vm366, %v834, 0
        %852 = vmatprep.subr.mxu0 0.0
        %853 = vmatpush1.msra.mxu0 0.0
        %854 = vmatprep.subr.mxu0 0.0
        %855 = vmatpush1.msra.mxu0 0.0
        %856 = vmatprep.subr.mxu0 0.0
        %857 = vmatpush1.msra.mxu0 0.0
        %858 = vmatprep.subr.mxu0 0.0
        %859 = vmatpush1.msra.mxu0 0.0
        %860 = vmatprep.subr.mxu0 0.0
        %861 = vmatpush1.msra.mxu0 0.0
        %862 = vmatprep.subr.mxu0 0.0
        %863 = vmatpush1.msra.mxu0 0.0
        %864 = vmatprep.subr.mxu0 0.0
        %865 = vmatpush1.msra.mxu0 0.0
        %866 = vmatprep.subr.mxu0 0.0
        %867 = vmatpush1.msra.mxu0 0.0
        %868 = vmatprep.subr.mxu0 0.0
        %869 = vmatpush1.msra.mxu0 0.0
        %870 = vmatprep.subr.mxu0 0.0
        %871 = vmatpush1.msra.mxu0 0.0
        %872 = vmatprep.subr.mxu0 0.0
        %873 = vmatpush1.msra.mxu0 0.0
        %874 = vmatprep.subr.mxu0 0.0
        %875 = vmatpush1.msra.mxu0 0.0
        %876 = vmatprep.subr.mxu0 0.0
        %877 = vmatpush1.msra.mxu0 0.0
        %878 = vmatprep.subr.mxu0 0.0
        %879 = vmatpush1.msra.mxu0 0.0
        %880 = vmatprep.subr.mxu0 0.0
        %881 = vmatpush1.msra.mxu0 0.0
        %882 = vmatprep.subr.mxu0 %v846
        %883 = vmatpush1.msra.mxu0 %v845
        %884 = vmatprep.subr.mxu0 0.0
        %885 = vmatpush2.msra.mxu0 0.0
        %886 = vmatprep.subr.mxu0 0.0
        %887 = vmatpush2.msra.mxu0 0.0
        %888 = vmatprep.subr.mxu0 0.0
        %889 = vmatpush2.msra.mxu0 0.0
        %890 = vmatprep.subr.mxu0 0.0
        %891 = vmatpush2.msra.mxu0 0.0
        %892 = vmatprep.subr.mxu0 0.0
        %893 = vmatpush2.msra.mxu0 0.0
        %894 = vmatprep.subr.mxu0 0.0
        %895 = vmatpush2.msra.mxu0 0.0
        %896 = vmatprep.subr.mxu0 0.0
        %897 = vmatpush2.msra.mxu0 0.0
        %898 = vmatprep.subr.mxu0 0.0
        %899 = vmatpush2.msra.mxu0 0.0
        %900 = vmatprep.subr.mxu0 0.0
        %901 = vmatpush2.msra.mxu0 0.0
        %902 = vmatprep.subr.mxu0 0.0
        %903 = vmatpush2.msra.mxu0 0.0
        %904 = vmatprep.subr.mxu0 0.0
        %905 = vmatpush2.msra.mxu0 0.0
        %906 = vmatprep.subr.mxu0 0.0
        %907 = vmatpush2.msra.mxu0 0.0
        %908 = vmatprep.subr.mxu0 0.0
        %909 = vmatpush2.msra.mxu0 0.0
        %910 = vmatprep.subr.mxu0 0.0
        %911 = vmatpush2.msra.mxu0 0.0
        %912 = vmatprep.subr.mxu0 0.0
        %913 = vmatpush2.msra.mxu0 0.0
        %914 = vmatprep.subr.mxu0 0.0
        %915 = vmatpush2.msra.mxu0 0.0
        %916 = vmatprep.mubr.f32.mxu0 0.0
        %917 = vmatmul.mubr.f32.gmra.mxu0 %v850
        %v918 = vpop.f32.mrf.mxu0
        %v919 = vadd.f32 0.0, %v918
        %v920 = vpop.f32.mrf.mxu0
        %v921 = vadd.f32 0.0, %v920
        %922 = vdwg.mxu0
        %v923 = vadd.f32 %v819, %v919
        %v924 = vadd.f32 %v820, %v921
        %925 = vrot.lane.b32.xlu0 %v339, 32
        %v926 = vpop.permute.xlu0 %925
        %927 = vrot.lane.b32.xlu0 %v343, 32
        %v928 = vpop.permute.xlu0 %927
        %vm929 = vcmask 261120
        %v930 = vsel %vm929, %v926, %v928
        %v934 = vmul.f32 %v333, %v926
        %v935 = vmul.f32 %v334, %v930
        %v936 = vmul.f32 %v349, %v928
        %s937 = scalar_lea.vmem %s1, 48
        %v938 = vld [vmem:[%s937] sm:$0xff]
        %942 = vrot.lane.b32.xlu0 %v934, 96
        %v943 = vpop.permute.xlu0 %942
        %944 = vrot.lane.b32.xlu0 %v935, 96
        %v945 = vpop.permute.xlu0 %944
        %946 = vrot.lane.b32.xlu0 %v936, 96
        %v947 = vpop.permute.xlu0 %946
        %vm948 = vcmask 785408
        %v949 = vsel %vm948, %v943, %v945
        %v950 = vsel %vm948, %v945, %v947
        %v954 = vsel %vm366, %v938, 0
        %956 = vmatprep.subr.mxu0 0.0
        %957 = vmatpush1.msra.mxu0 0.0
        %958 = vmatprep.subr.mxu0 0.0
        %959 = vmatpush1.msra.mxu0 0.0
        %960 = vmatprep.subr.mxu0 0.0
        %961 = vmatpush1.msra.mxu0 0.0
        %962 = vmatprep.subr.mxu0 0.0
        %963 = vmatpush1.msra.mxu0 0.0
        %964 = vmatprep.subr.mxu0 0.0
        %965 = vmatpush1.msra.mxu0 0.0
        %966 = vmatprep.subr.mxu0 0.0
        %967 = vmatpush1.msra.mxu0 0.0
        %968 = vmatprep.subr.mxu0 0.0
        %969 = vmatpush1.msra.mxu0 0.0
        %970 = vmatprep.subr.mxu0 0.0
        %971 = vmatpush1.msra.mxu0 0.0
        %972 = vmatprep.subr.mxu0 0.0
        %973 = vmatpush1.msra.mxu0 0.0
        %974 = vmatprep.subr.mxu0 0.0
        %975 = vmatpush1.msra.mxu0 0.0
        %976 = vmatprep.subr.mxu0 0.0
        %977 = vmatpush1.msra.mxu0 0.0
        %978 = vmatprep.subr.mxu0 0.0
        %979 = vmatpush1.msra.mxu0 0.0
        %980 = vmatprep.subr.mxu0 0.0
        %981 = vmatpush1.msra.mxu0 0.0
        %982 = vmatprep.subr.mxu0 0.0
        %983 = vmatpush1.msra.mxu0 0.0
        %984 = vmatprep.subr.mxu0 0.0
        %985 = vmatpush1.msra.mxu0 0.0
        %986 = vmatprep.subr.mxu0 %v950
        %987 = vmatpush1.msra.mxu0 %v949
        %988 = vmatprep.subr.mxu0 0.0
        %989 = vmatpush2.msra.mxu0 0.0
        %990 = vmatprep.subr.mxu0 0.0
        %991 = vmatpush2.msra.mxu0 0.0
        %992 = vmatprep.subr.mxu0 0.0
        %993 = vmatpush2.msra.mxu0 0.0
        %994 = vmatprep.subr.mxu0 0.0
        %995 = vmatpush2.msra.mxu0 0.0
        %996 = vmatprep.subr.mxu0 0.0
        %997 = vmatpush2.msra.mxu0 0.0
        %998 = vmatprep.subr.mxu0 0.0
        %999 = vmatpush2.msra.mxu0 0.0
        %1000 = vmatprep.subr.mxu0 0.0
        %1001 = vmatpush2.msra.mxu0 0.0
        %1002 = vmatprep.subr.mxu0 0.0
        %1003 = vmatpush2.msra.mxu0 0.0
        %1004 = vmatprep.subr.mxu0 0.0
        %1005 = vmatpush2.msra.mxu0 0.0
        %1006 = vmatprep.subr.mxu0 0.0
        %1007 = vmatpush2.msra.mxu0 0.0
        %1008 = vmatprep.subr.mxu0 0.0
        %1009 = vmatpush2.msra.mxu0 0.0
        %1010 = vmatprep.subr.mxu0 0.0
        %1011 = vmatpush2.msra.mxu0 0.0
        %1012 = vmatprep.subr.mxu0 0.0
        %1013 = vmatpush2.msra.mxu0 0.0
        %1014 = vmatprep.subr.mxu0 0.0
        %1015 = vmatpush2.msra.mxu0 0.0
        %1016 = vmatprep.subr.mxu0 0.0
        %1017 = vmatpush2.msra.mxu0 0.0
        %1018 = vmatprep.subr.mxu0 0.0
        %1019 = vmatpush2.msra.mxu0 0.0
        %1020 = vmatprep.mubr.f32.mxu0 0.0
        %1021 = vmatmul.mubr.f32.gmra.mxu0 %v954
        %v1022 = vpop.f32.mrf.mxu0
        %v1023 = vadd.f32 0.0, %v1022
        %v1024 = vpop.f32.mrf.mxu0
        %v1025 = vadd.f32 0.0, %v1024
        %1026 = vdwg.mxu0
        %v1027 = vadd.f32 %v923, %v1023
        %v1028 = vadd.f32 %v924, %v1025
        %s1029 = scalar_lea.vmem %s1, 56
        %v1030 = vld [vmem:[%s1029] sm:$0xff]
        %1031 = vrot.lane.b32.xlu0 %v333, 95
        %v1032 = vpop.permute.xlu0 %1031
        %1033 = vrot.lane.b32.xlu0 %v334, 95
        %v1034 = vpop.permute.xlu0 %1033
        %1035 = vrot.lane.b32.xlu0 %v349, 95
        %v1036 = vpop.permute.xlu0 %1035
        %vm1037 = vcmask 777216
        %v1038 = vsel %vm1037, %v1032, %v1034
        %v1039 = vsel %vm1037, %v1034, %v1036
        %v1043 = vsel %vm366, %v1030, 0
        %1045 = vmatprep.subr.mxu0 0.0
        %1046 = vmatpush1.msra.mxu0 0.0
        %1047 = vmatprep.subr.mxu0 0.0
        %1048 = vmatpush1.msra.mxu0 0.0
        %1049 = vmatprep.subr.mxu0 0.0
        %1050 = vmatpush1.msra.mxu0 0.0
        %1051 = vmatprep.subr.mxu0 0.0
        %1052 = vmatpush1.msra.mxu0 0.0
        %1053 = vmatprep.subr.mxu0 0.0
        %1054 = vmatpush1.msra.mxu0 0.0
        %1055 = vmatprep.subr.mxu0 0.0
        %1056 = vmatpush1.msra.mxu0 0.0
        %1057 = vmatprep.subr.mxu0 0.0
        %1058 = vmatpush1.msra.mxu0 0.0
        %1059 = vmatprep.subr.mxu0 0.0
        %1060 = vmatpush1.msra.mxu0 0.0
        %1061 = vmatprep.subr.mxu0 0.0
        %1062 = vmatpush1.msra.mxu0 0.0
        %1063 = vmatprep.subr.mxu0 0.0
        %1064 = vmatpush1.msra.mxu0 0.0
        %1065 = vmatprep.subr.mxu0 0.0
        %1066 = vmatpush1.msra.mxu0 0.0
        %1067 = vmatprep.subr.mxu0 0.0
        %1068 = vmatpush1.msra.mxu0 0.0
        %1069 = vmatprep.subr.mxu0 0.0
        %1070 = vmatpush1.msra.mxu0 0.0
        %1071 = vmatprep.subr.mxu0 0.0
        %1072 = vmatpush1.msra.mxu0 0.0
        %1073 = vmatprep.subr.mxu0 0.0
        %1074 = vmatpush1.msra.mxu0 0.0
        %1075 = vmatprep.subr.mxu0 %v1039
        %1076 = vmatpush1.msra.mxu0 %v1038
        %1077 = vmatprep.subr.mxu0 0.0
        %1078 = vmatpush2.msra.mxu0 0.0
        %1079 = vmatprep.subr.mxu0 0.0
        %1080 = vmatpush2.msra.mxu0 0.0
        %1081 = vmatprep.subr.mxu0 0.0
        %1082 = vmatpush2.msra.mxu0 0.0
        %1083 = vmatprep.subr.mxu0 0.0
        %1084 = vmatpush2.msra.mxu0 0.0
        %1085 = vmatprep.subr.mxu0 0.0
        %1086 = vmatpush2.msra.mxu0 0.0
        %1087 = vmatprep.subr.mxu0 0.0
        %1088 = vmatpush2.msra.mxu0 0.0
        %1089 = vmatprep.subr.mxu0 0.0
        %1090 = vmatpush2.msra.mxu0 0.0
        %1091 = vmatprep.subr.mxu0 0.0
        %1092 = vmatpush2.msra.mxu0 0.0
        %1093 = vmatprep.subr.mxu0 0.0
        %1094 = vmatpush2.msra.mxu0 0.0
        %1095 = vmatprep.subr.mxu0 0.0
        %1096 = vmatpush2.msra.mxu0 0.0
        %1097 = vmatprep.subr.mxu0 0.0
        %1098 = vmatpush2.msra.mxu0 0.0
        %1099 = vmatprep.subr.mxu0 0.0
        %1100 = vmatpush2.msra.mxu0 0.0
        %1101 = vmatprep.subr.mxu0 0.0
        %1102 = vmatpush2.msra.mxu0 0.0
        %1103 = vmatprep.subr.mxu0 0.0
        %1104 = vmatpush2.msra.mxu0 0.0
        %1105 = vmatprep.subr.mxu0 0.0
        %1106 = vmatpush2.msra.mxu0 0.0
        %1107 = vmatprep.subr.mxu0 0.0
        %1108 = vmatpush2.msra.mxu0 0.0
        %1109 = vmatprep.mubr.f32.mxu0 0.0
        %1110 = vmatmul.mubr.f32.gmra.mxu0 %v1043
        %v1111 = vpop.f32.mrf.mxu0
        %v1112 = vadd.f32 0.0, %v1111
        %v1113 = vpop.f32.mrf.mxu0
        %v1114 = vadd.f32 0.0, %v1113
        %1115 = vdwg.mxu0
        %v1116 = vadd.f32 %v1027, %v1112
        %v1117 = vadd.f32 %v1028, %v1114
        %1118 = vrot.lane.b32.xlu0 %v519, 34
        %v1119 = vpop.permute.xlu0 %1118
        %1120 = vrot.lane.b32.xlu0 %v523, 34
        %v1121 = vpop.permute.xlu0 %1120
        %vm1122 = vcmask 277504
        %v1123 = vsel %vm1122, %v1119, %v1121
        %v1127 = vmul.f32 %v333, %v1119
        %v1128 = vmul.f32 %v334, %v1123
        %v1129 = vmul.f32 %v349, %v1121
        %s1130 = scalar_lea.vmem %s1, 64
        %v1131 = vld [vmem:[%s1130] sm:$0xff]
        %1135 = vrot.lane.b32.xlu0 %v1127, 94
        %v1136 = vpop.permute.xlu0 %1135
        %1137 = vrot.lane.b32.xlu0 %v1128, 94
        %v1138 = vpop.permute.xlu0 %1137
        %1139 = vrot.lane.b32.xlu0 %v1129, 94
        %v1140 = vpop.permute.xlu0 %1139
        %vm1141 = vcmask 769024
        %v1142 = vsel %vm1141, %v1136, %v1138
        %v1143 = vsel %vm1141, %v1138, %v1140
        %v1147 = vsel %vm366, %v1131, 0
        %1149 = vmatprep.subr.mxu0 0.0
        %1150 = vmatpush1.msra.mxu0 0.0
        %1151 = vmatprep.subr.mxu0 0.0
        %1152 = vmatpush1.msra.mxu0 0.0
        %1153 = vmatprep.subr.mxu0 0.0
        %1154 = vmatpush1.msra.mxu0 0.0
        %1155 = vmatprep.subr.mxu0 0.0
        %1156 = vmatpush1.msra.mxu0 0.0
        %1157 = vmatprep.subr.mxu0 0.0
        %1158 = vmatpush1.msra.mxu0 0.0
        %1159 = vmatprep.subr.mxu0 0.0
        %1160 = vmatpush1.msra.mxu0 0.0
        %1161 = vmatprep.subr.mxu0 0.0
        %1162 = vmatpush1.msra.mxu0 0.0
        %1163 = vmatprep.subr.mxu0 0.0
        %1164 = vmatpush1.msra.mxu0 0.0
        %1165 = vmatprep.subr.mxu0 0.0
        %1166 = vmatpush1.msra.mxu0 0.0
        %1167 = vmatprep.subr.mxu0 0.0
        %1168 = vmatpush1.msra.mxu0 0.0
        %1169 = vmatprep.subr.mxu0 0.0
        %1170 = vmatpush1.msra.mxu0 0.0
        %1171 = vmatprep.subr.mxu0 0.0
        %1172 = vmatpush1.msra.mxu0 0.0
        %1173 = vmatprep.subr.mxu0 0.0
        %1174 = vmatpush1.msra.mxu0 0.0
        %1175 = vmatprep.subr.mxu0 0.0
        %1176 = vmatpush1.msra.mxu0 0.0
        %1177 = vmatprep.subr.mxu0 0.0
        %1178 = vmatpush1.msra.mxu0 0.0
        %1179 = vmatprep.subr.mxu0 %v1143
        %1180 = vmatpush1.msra.mxu0 %v1142
        %1181 = vmatprep.subr.mxu0 0.0
        %1182 = vmatpush2.msra.mxu0 0.0
        %1183 = vmatprep.subr.mxu0 0.0
        %1184 = vmatpush2.msra.mxu0 0.0
        %1185 = vmatprep.subr.mxu0 0.0
        %1186 = vmatpush2.msra.mxu0 0.0
        %1187 = vmatprep.subr.mxu0 0.0
        %1188 = vmatpush2.msra.mxu0 0.0
        %1189 = vmatprep.subr.mxu0 0.0
        %1190 = vmatpush2.msra.mxu0 0.0
        %1191 = vmatprep.subr.mxu0 0.0
        %1192 = vmatpush2.msra.mxu0 0.0
        %1193 = vmatprep.subr.mxu0 0.0
        %1194 = vmatpush2.msra.mxu0 0.0
        %1195 = vmatprep.subr.mxu0 0.0
        %1196 = vmatpush2.msra.mxu0 0.0
        %1197 = vmatprep.subr.mxu0 0.0
        %1198 = vmatpush2.msra.mxu0 0.0
        %1199 = vmatprep.subr.mxu0 0.0
        %1200 = vmatpush2.msra.mxu0 0.0
        %1201 = vmatprep.subr.mxu0 0.0
        %1202 = vmatpush2.msra.mxu0 0.0
        %1203 = vmatprep.subr.mxu0 0.0
        %1204 = vmatpush2.msra.mxu0 0.0
        %1205 = vmatprep.subr.mxu0 0.0
        %1206 = vmatpush2.msra.mxu0 0.0
        %1207 = vmatprep.subr.mxu0 0.0
        %1208 = vmatpush2.msra.mxu0 0.0
        %1209 = vmatprep.subr.mxu0 0.0
        %1210 = vmatpush2.msra.mxu0 0.0
        %1211 = vmatprep.subr.mxu0 0.0
        %1212 = vmatpush2.msra.mxu0 0.0
        %1213 = vmatprep.mubr.f32.mxu0 0.0
        %1214 = vmatmul.mubr.f32.gmra.mxu0 %v1147
        %v1215 = vpop.f32.mrf.mxu0
        %v1216 = vadd.f32 0.0, %v1215
        %v1217 = vpop.f32.mrf.mxu0
        %v1218 = vadd.f32 0.0, %v1217
        %1219 = vdwg.mxu0
        %v1220 = vadd.f32 %v1116, %v1216
        %v1221 = vadd.f32 %v1117, %v1218
        %v1222 = vld [vmem:[%s2] sm:$0xff]
        %1224 = vset.pattern.permute.xlu0 0
        %1225 = vperm.xlu0 %1224, %v1222
        %v1226 = vpop.permute.xlu0 %1225
        %v1228 = vadd.f32 %v1220, %v1226
        %v1229 = vadd.f32 %v1221, %v1226
        %v1230 = vmax.f32 %v1228, 0.0
        %v1231 = vmax.f32 %v1229, 0.0
        %vm1232 = vcmask 138240
        %1233 = vst.msk [vmem:[#allocation2] sm:$0xff] %vm1232, 0.0
        %vm1234 = vcmask 392328
        %1235 = vst.msk [vmem:[#allocation2 + $0x10] sm:$0xff] %vm1234, 0.0
        %1238 = vrot.lane.b32.xlu0 %v1230, 17
        %v1239 = vpop.permute.xlu0 %1238
        %1240 = vrot.lane.b32.xlu0 %v1231, 17
        %v1241 = vpop.permute.xlu0 %1240
        %v1242 = vsel %vm1232, %v1239, %v1241
        %vm1246 = vcmask 1047688
        %1247 = vst.msk [vmem:[#allocation2] sm:$0xff] %vm1246, %v1239
        %1248 = vst [vmem:[#allocation2 + $0x8] sm:$0xff] %v1242
        %1249 = vst.msk [vmem:[#allocation2 + $0x10] sm:$0xff] %vm1232, %v1241
        %v1250 = vld [vmem:[#allocation2] sm:$0xff]
        %v1251 = vld [vmem:[#allocation2 + $0x8] sm:$0xff]
        %v1252 = vmul.f32 %v1250, %v339
        %v1253 = vmul.f32 %v1251, %v343
        %v1254 = vld [vmem:[%s3] sm:$0xff]
        %v1255 = vld [vmem:[%s3 + $0x8] sm:$0xff]
        %v1256 = vld [vmem:[%s3 + $0x10] sm:$0xff]
        %v1257 = vld [vmem:[#allocation2 + $0x10] sm:$0xff]
        %s1258 = scalar_lea.vmem %s3, 24
        %v1259 = vld [vmem:[%s1258] sm:$0xff]
        %v1260 = vld [vmem:[%s1258 + $0x8] sm:$0xff]
        %v1261 = vld [vmem:[%s1258 + $0x10] sm:$0xff]
        %1265 = vrot.lane.b32.xlu0 %v1250, 127
        %v1266 = vpop.permute.xlu0 %1265
        %1267 = vrot.lane.b32.xlu0 %v1251, 127
        %v1268 = vpop.permute.xlu0 %1267
        %1269 = vrot.lane.b32.xlu0 %v1257, 127
        %v1270 = vpop.permute.xlu0 %1269
        %v1271 = vsel %vm361, %v1266, %v1268
        %v1272 = vsel %vm361, %v1268, %v1270
        %v1276 = vsel %vm366, %v1259, 0
        %v1279 = vsel %vm366, %v1260, 0
        %v1282 = vsel %vm366, %v1261, 0
        %1284 = vmatprep.subr.mxu0 0.0
        %1285 = vmatpush1.msra.mxu0 0.0
        %1286 = vmatprep.subr.mxu0 0.0
        %1287 = vmatpush1.msra.mxu0 0.0
        %1288 = vmatprep.subr.mxu0 0.0
        %1289 = vmatpush1.msra.mxu0 0.0
        %1290 = vmatprep.subr.mxu0 0.0
        %1291 = vmatpush1.msra.mxu0 0.0
        %1292 = vmatprep.subr.mxu0 0.0
        %1293 = vmatpush1.msra.mxu0 0.0
        %1294 = vmatprep.subr.mxu0 0.0
        %1295 = vmatpush1.msra.mxu0 0.0
        %1296 = vmatprep.subr.mxu0 0.0
        %1297 = vmatpush1.msra.mxu0 0.0
        %1298 = vmatprep.subr.mxu0 0.0
        %1299 = vmatpush1.msra.mxu0 0.0
        %1300 = vmatprep.subr.mxu0 0.0
        %1301 = vmatpush1.msra.mxu0 0.0
        %1302 = vmatprep.subr.mxu0 0.0
        %1303 = vmatpush1.msra.mxu0 0.0
        %1304 = vmatprep.subr.mxu0 0.0
        %1305 = vmatpush1.msra.mxu0 0.0
        %1306 = vmatprep.subr.mxu0 0.0
        %1307 = vmatpush1.msra.mxu0 0.0
        %1308 = vmatprep.subr.mxu0 0.0
        %1309 = vmatpush1.msra.mxu0 0.0
        %1310 = vmatprep.subr.mxu0 0.0
        %1311 = vmatpush1.msra.mxu0 0.0
        %1312 = vmatprep.subr.mxu0 0.0
        %1313 = vmatpush1.msra.mxu0 0.0
        %1314 = vmatprep.subr.mxu0 %v1272
        %1315 = vmatpush1.msra.mxu0 %v1271
        %1316 = vmatprep.subr.mxu0 0.0
        %1317 = vmatpush2.msra.mxu0 0.0
        %1318 = vmatprep.subr.mxu0 0.0
        %1319 = vmatpush2.msra.mxu0 0.0
        %1320 = vmatprep.subr.mxu0 0.0
        %1321 = vmatpush2.msra.mxu0 0.0
        %1322 = vmatprep.subr.mxu0 0.0
        %1323 = vmatpush2.msra.mxu0 0.0
        %1324 = vmatprep.subr.mxu0 0.0
        %1325 = vmatpush2.msra.mxu0 0.0
        %1326 = vmatprep.subr.mxu0 0.0
        %1327 = vmatpush2.msra.mxu0 0.0
        %1328 = vmatprep.subr.mxu0 0.0
        %1329 = vmatpush2.msra.mxu0 0.0
        %1330 = vmatprep.subr.mxu0 0.0
        %1331 = vmatpush2.msra.mxu0 0.0
        %1332 = vmatprep.subr.mxu0 0.0
        %1333 = vmatpush2.msra.mxu0 0.0
        %1334 = vmatprep.subr.mxu0 0.0
        %1335 = vmatpush2.msra.mxu0 0.0
        %1336 = vmatprep.subr.mxu0 0.0
        %1337 = vmatpush2.msra.mxu0 0.0
        %1338 = vmatprep.subr.mxu0 0.0
        %1339 = vmatpush2.msra.mxu0 0.0
        %1340 = vmatprep.subr.mxu0 0.0
        %1341 = vmatpush2.msra.mxu0 0.0
        %1342 = vmatprep.subr.mxu0 0.0
        %1343 = vmatpush2.msra.mxu0 0.0
        %1344 = vmatprep.subr.mxu0 0.0
        %1345 = vmatpush2.msra.mxu0 0.0
        %1346 = vmatprep.subr.mxu0 0.0
        %1347 = vmatpush2.msra.mxu0 0.0
        %1348 = vmatprep.mubr.f32.mxu0 0.0
        %1349 = vmatmul.mubr.f32.gmra.mxu0 %v1276
        %v1350 = vpop.f32.mrf.mxu0
        %v1351 = vadd.f32 0.0, %v1350
        %v1352 = vpop.f32.mrf.mxu0
        %v1353 = vadd.f32 0.0, %v1352
        %1354 = vmatprep.mubr.f32.mxu0 0.0
        %1355 = vmatmul.mubr.f32.gmra.mxu0 %v1279
        %v1356 = vpop.f32.mrf.mxu0
        %v1357 = vadd.f32 0.0, %v1356
        %v1358 = vpop.f32.mrf.mxu0
        %v1359 = vadd.f32 0.0, %v1358
        %1360 = vmatprep.mubr.f32.mxu0 0.0
        %1361 = vmatmul.mubr.f32.gmra.mxu0 %v1282
        %v1362 = vpop.f32.mrf.mxu0
        %v1363 = vadd.f32 0.0, %v1362
        %v1364 = vpop.f32.mrf.mxu0
        %v1365 = vadd.f32 0.0, %v1364
        %1366 = vdwg.mxu0
        %v1368 = vsel %vm366, %v1254, 0
        %v1371 = vsel %vm366, %v1255, 0
        %v1374 = vsel %vm366, %v1256, 0
        %1376 = vmatprep.subr.mxu0 0.0
        %1377 = vmatpush1.msra.mxu0 0.0
        %1378 = vmatprep.subr.mxu0 0.0
        %1379 = vmatpush1.msra.mxu0 0.0
        %1380 = vmatprep.subr.mxu0 0.0
        %1381 = vmatpush1.msra.mxu0 0.0
        %1382 = vmatprep.subr.mxu0 0.0
        %1383 = vmatpush1.msra.mxu0 0.0
        %1384 = vmatprep.subr.mxu0 0.0
        %1385 = vmatpush1.msra.mxu0 0.0
        %1386 = vmatprep.subr.mxu0 0.0
        %1387 = vmatpush1.msra.mxu0 0.0
        %1388 = vmatprep.subr.mxu0 0.0
        %1389 = vmatpush1.msra.mxu0 0.0
        %1390 = vmatprep.subr.mxu0 0.0
        %1391 = vmatpush1.msra.mxu0 0.0
        %1392 = vmatprep.subr.mxu0 0.0
        %1393 = vmatpush1.msra.mxu0 0.0
        %1394 = vmatprep.subr.mxu0 0.0
        %1395 = vmatpush1.msra.mxu0 0.0
        %1396 = vmatprep.subr.mxu0 0.0
        %1397 = vmatpush1.msra.mxu0 0.0
        %1398 = vmatprep.subr.mxu0 0.0
        %1399 = vmatpush1.msra.mxu0 0.0
        %1400 = vmatprep.subr.mxu0 0.0
        %1401 = vmatpush1.msra.mxu0 0.0
        %1402 = vmatprep.subr.mxu0 0.0
        %1403 = vmatpush1.msra.mxu0 0.0
        %1404 = vmatprep.subr.mxu0 0.0
        %1405 = vmatpush1.msra.mxu0 0.0
        %1406 = vmatprep.subr.mxu0 %v1253
        %1407 = vmatpush1.msra.mxu0 %v1252
        %1408 = vmatprep.subr.mxu0 0.0
        %1409 = vmatpush2.msra.mxu0 0.0
        %1410 = vmatprep.subr.mxu0 0.0
        %1411 = vmatpush2.msra.mxu0 0.0
        %1412 = vmatprep.subr.mxu0 0.0
        %1413 = vmatpush2.msra.mxu0 0.0
        %1414 = vmatprep.subr.mxu0 0.0
        %1415 = vmatpush2.msra.mxu0 0.0
        %1416 = vmatprep.subr.mxu0 0.0
        %1417 = vmatpush2.msra.mxu0 0.0
        %1418 = vmatprep.subr.mxu0 0.0
        %1419 = vmatpush2.msra.mxu0 0.0
        %1420 = vmatprep.subr.mxu0 0.0
        %1421 = vmatpush2.msra.mxu0 0.0
        %1422 = vmatprep.subr.mxu0 0.0
        %1423 = vmatpush2.msra.mxu0 0.0
        %1424 = vmatprep.subr.mxu0 0.0
        %1425 = vmatpush2.msra.mxu0 0.0
        %1426 = vmatprep.subr.mxu0 0.0
        %1427 = vmatpush2.msra.mxu0 0.0
        %1428 = vmatprep.subr.mxu0 0.0
        %1429 = vmatpush2.msra.mxu0 0.0
        %1430 = vmatprep.subr.mxu0 0.0
        %1431 = vmatpush2.msra.mxu0 0.0
        %1432 = vmatprep.subr.mxu0 0.0
        %1433 = vmatpush2.msra.mxu0 0.0
        %1434 = vmatprep.subr.mxu0 0.0
        %1435 = vmatpush2.msra.mxu0 0.0
        %1436 = vmatprep.subr.mxu0 0.0
        %1437 = vmatpush2.msra.mxu0 0.0
        %1438 = vmatprep.subr.mxu0 0.0
        %1439 = vmatpush2.msra.mxu0 0.0
        %1440 = vmatprep.mubr.f32.mxu0 0.0
        %1441 = vmatmul.mubr.f32.gmra.mxu0 %v1368
        %v1442 = vpop.f32.mrf.mxu0
        %v1443 = vadd.f32 %v1351, %v1442
        %v1444 = vpop.f32.mrf.mxu0
        %v1445 = vadd.f32 %v1353, %v1444
        %1446 = vmatprep.mubr.f32.mxu0 0.0
        %1447 = vmatmul.mubr.f32.gmra.mxu0 %v1371
        %v1448 = vpop.f32.mrf.mxu0
        %v1449 = vadd.f32 %v1357, %v1448
        %v1450 = vpop.f32.mrf.mxu0
        %v1451 = vadd.f32 %v1359, %v1450
        %1452 = vmatprep.mubr.f32.mxu0 0.0
        %1453 = vmatmul.mubr.f32.gmra.mxu0 %v1374
        %v1454 = vpop.f32.mrf.mxu0
        %v1455 = vadd.f32 %v1363, %v1454
        %v1456 = vpop.f32.mrf.mxu0
        %v1457 = vadd.f32 %v1365, %v1456
        %1458 = vdwg.mxu0
        %v1459 = vmul.f32 %v1250, %v525
        %v1460 = vmul.f32 %v1251, %v529
        %v1461 = vmul.f32 %v1257, %v527
        %s1462 = scalar_lea.vmem %s3, 48
        %v1463 = vld [vmem:[%s1462] sm:$0xff]
        %v1464 = vld [vmem:[%s1462 + $0x8] sm:$0xff]
        %v1465 = vld [vmem:[%s1462 + $0x10] sm:$0xff]
        %1469 = vrot.lane.b32.xlu0 %v1459, 126
        %v1470 = vpop.permute.xlu0 %1469
        %1471 = vrot.lane.b32.xlu0 %v1460, 126
        %v1472 = vpop.permute.xlu0 %1471
        %1473 = vrot.lane.b32.xlu0 %v1461, 126
        %v1474 = vpop.permute.xlu0 %1473
        %v1475 = vsel %vm547, %v1470, %v1472
        %v1476 = vsel %vm547, %v1472, %v1474
        %v1480 = vsel %vm366, %v1463, 0
        %v1483 = vsel %vm366, %v1464, 0
        %v1486 = vsel %vm366, %v1465, 0
        %1488 = vmatprep.subr.mxu0 0.0
        %1489 = vmatpush1.msra.mxu0 0.0
        %1490 = vmatprep.subr.mxu0 0.0
        %1491 = vmatpush1.msra.mxu0 0.0
        %1492 = vmatprep.subr.mxu0 0.0
        %1493 = vmatpush1.msra.mxu0 0.0
        %1494 = vmatprep.subr.mxu0 0.0
        %1495 = vmatpush1.msra.mxu0 0.0
        %1496 = vmatprep.subr.mxu0 0.0
        %1497 = vmatpush1.msra.mxu0 0.0
        %1498 = vmatprep.subr.mxu0 0.0
        %1499 = vmatpush1.msra.mxu0 0.0
        %1500 = vmatprep.subr.mxu0 0.0
        %1501 = vmatpush1.msra.mxu0 0.0
        %1502 = vmatprep.subr.mxu0 0.0
        %1503 = vmatpush1.msra.mxu0 0.0
        %1504 = vmatprep.subr.mxu0 0.0
        %1505 = vmatpush1.msra.mxu0 0.0
        %1506 = vmatprep.subr.mxu0 0.0
        %1507 = vmatpush1.msra.mxu0 0.0
        %1508 = vmatprep.subr.mxu0 0.0
        %1509 = vmatpush1.msra.mxu0 0.0
        %1510 = vmatprep.subr.mxu0 0.0
        %1511 = vmatpush1.msra.mxu0 0.0
        %1512 = vmatprep.subr.mxu0 0.0
        %1513 = vmatpush1.msra.mxu0 0.0
        %1514 = vmatprep.subr.mxu0 0.0
        %1515 = vmatpush1.msra.mxu0 0.0
        %1516 = vmatprep.subr.mxu0 0.0
        %1517 = vmatpush1.msra.mxu0 0.0
        %1518 = vmatprep.subr.mxu0 %v1476
        %1519 = vmatpush1.msra.mxu0 %v1475
        %1520 = vmatprep.subr.mxu0 0.0
        %1521 = vmatpush2.msra.mxu0 0.0
        %1522 = vmatprep.subr.mxu0 0.0
        %1523 = vmatpush2.msra.mxu0 0.0
        %1524 = vmatprep.subr.mxu0 0.0
        %1525 = vmatpush2.msra.mxu0 0.0
        %1526 = vmatprep.subr.mxu0 0.0
        %1527 = vmatpush2.msra.mxu0 0.0
        %1528 = vmatprep.subr.mxu0 0.0
        %1529 = vmatpush2.msra.mxu0 0.0
        %1530 = vmatprep.subr.mxu0 0.0
        %1531 = vmatpush2.msra.mxu0 0.0
        %1532 = vmatprep.subr.mxu0 0.0
        %1533 = vmatpush2.msra.mxu0 0.0
        %1534 = vmatprep.subr.mxu0 0.0
        %1535 = vmatpush2.msra.mxu0 0.0
        %1536 = vmatprep.subr.mxu0 0.0
        %1537 = vmatpush2.msra.mxu0 0.0
        %1538 = vmatprep.subr.mxu0 0.0
        %1539 = vmatpush2.msra.mxu0 0.0
        %1540 = vmatprep.subr.mxu0 0.0
        %1541 = vmatpush2.msra.mxu0 0.0
        %1542 = vmatprep.subr.mxu0 0.0
        %1543 = vmatpush2.msra.mxu0 0.0
        %1544 = vmatprep.subr.mxu0 0.0
        %1545 = vmatpush2.msra.mxu0 0.0
        %1546 = vmatprep.subr.mxu0 0.0
        %1547 = vmatpush2.msra.mxu0 0.0
        %1548 = vmatprep.subr.mxu0 0.0
        %1549 = vmatpush2.msra.mxu0 0.0
        %1550 = vmatprep.subr.mxu0 0.0
        %1551 = vmatpush2.msra.mxu0 0.0
        %1552 = vmatprep.mubr.f32.mxu0 0.0
        %1553 = vmatmul.mubr.f32.gmra.mxu0 %v1480
        %v1554 = vpop.f32.mrf.mxu0
        %v1555 = vadd.f32 0.0, %v1554
        %v1556 = vpop.f32.mrf.mxu0
        %v1557 = vadd.f32 0.0, %v1556
        %1558 = vmatprep.mubr.f32.mxu0 0.0
        %1559 = vmatmul.mubr.f32.gmra.mxu0 %v1483
        %v1560 = vpop.f32.mrf.mxu0
        %v1561 = vadd.f32 0.0, %v1560
        %v1562 = vpop.f32.mrf.mxu0
        %v1563 = vadd.f32 0.0, %v1562
        %1564 = vmatprep.mubr.f32.mxu0 0.0
        %1565 = vmatmul.mubr.f32.gmra.mxu0 %v1486
        %v1566 = vpop.f32.mrf.mxu0
        %v1567 = vadd.f32 0.0, %v1566
        %v1568 = vpop.f32.mrf.mxu0
        %v1569 = vadd.f32 0.0, %v1568
        %1570 = vdwg.mxu0
        %v1571 = vadd.f32 %v1443, %v1555
        %v1572 = vadd.f32 %v1445, %v1557
        %v1573 = vadd.f32 %v1449, %v1561
        %v1574 = vadd.f32 %v1451, %v1563
        %v1575 = vadd.f32 %v1455, %v1567
        %v1576 = vadd.f32 %v1457, %v1569
        %v1577 = vmul.f32 %v1250, %v629
        %v1578 = vmul.f32 %v1251, %v633
        %v1579 = vmul.f32 %v1257, %v631
        %s1580 = scalar_lea.vmem %s3, 72
        %v1581 = vld [vmem:[%s1580] sm:$0xff]
        %v1582 = vld [vmem:[%s1580 + $0x8] sm:$0xff]
        %v1583 = vld [vmem:[%s1580 + $0x10] sm:$0xff]
        %1587 = vrot.lane.b32.xlu0 %v1577, 112
        %v1588 = vpop.permute.xlu0 %1587
        %1589 = vrot.lane.b32.xlu0 %v1578, 112
        %v1590 = vpop.permute.xlu0 %1589
        %1591 = vrot.lane.b32.xlu0 %v1579, 112
        %v1592 = vpop.permute.xlu0 %1591
        %v1593 = vsel %vm651, %v1588, %v1590
        %v1594 = vsel %vm651, %v1590, %v1592
        %v1598 = vsel %vm366, %v1581, 0
        %v1601 = vsel %vm366, %v1582, 0
        %v1604 = vsel %vm366, %v1583, 0
        %1606 = vmatprep.subr.mxu0 0.0
        %1607 = vmatpush1.msra.mxu0 0.0
        %1608 = vmatprep.subr.mxu0 0.0
        %1609 = vmatpush1.msra.mxu0 0.0
        %1610 = vmatprep.subr.mxu0 0.0
        %1611 = vmatpush1.msra.mxu0 0.0
        %1612 = vmatprep.subr.mxu0 0.0
        %1613 = vmatpush1.msra.mxu0 0.0
        %1614 = vmatprep.subr.mxu0 0.0
        %1615 = vmatpush1.msra.mxu0 0.0
        %1616 = vmatprep.subr.mxu0 0.0
        %1617 = vmatpush1.msra.mxu0 0.0
        %1618 = vmatprep.subr.mxu0 0.0
        %1619 = vmatpush1.msra.mxu0 0.0
        %1620 = vmatprep.subr.mxu0 0.0
        %1621 = vmatpush1.msra.mxu0 0.0
        %1622 = vmatprep.subr.mxu0 0.0
        %1623 = vmatpush1.msra.mxu0 0.0
        %1624 = vmatprep.subr.mxu0 0.0
        %1625 = vmatpush1.msra.mxu0 0.0
        %1626 = vmatprep.subr.mxu0 0.0
        %1627 = vmatpush1.msra.mxu0 0.0
        %1628 = vmatprep.subr.mxu0 0.0
        %1629 = vmatpush1.msra.mxu0 0.0
        %1630 = vmatprep.subr.mxu0 0.0
        %1631 = vmatpush1.msra.mxu0 0.0
        %1632 = vmatprep.subr.mxu0 0.0
        %1633 = vmatpush1.msra.mxu0 0.0
        %1634 = vmatprep.subr.mxu0 0.0
        %1635 = vmatpush1.msra.mxu0 0.0
        %1636 = vmatprep.subr.mxu0 %v1594
        %1637 = vmatpush1.msra.mxu0 %v1593
        %1638 = vmatprep.subr.mxu0 0.0
        %1639 = vmatpush2.msra.mxu0 0.0
        %1640 = vmatprep.subr.mxu0 0.0
        %1641 = vmatpush2.msra.mxu0 0.0
        %1642 = vmatprep.subr.mxu0 0.0
        %1643 = vmatpush2.msra.mxu0 0.0
        %1644 = vmatprep.subr.mxu0 0.0
        %1645 = vmatpush2.msra.mxu0 0.0
        %1646 = vmatprep.subr.mxu0 0.0
        %1647 = vmatpush2.msra.mxu0 0.0
        %1648 = vmatprep.subr.mxu0 0.0
        %1649 = vmatpush2.msra.mxu0 0.0
        %1650 = vmatprep.subr.mxu0 0.0
        %1651 = vmatpush2.msra.mxu0 0.0
        %1652 = vmatprep.subr.mxu0 0.0
        %1653 = vmatpush2.msra.mxu0 0.0
        %1654 = vmatprep.subr.mxu0 0.0
        %1655 = vmatpush2.msra.mxu0 0.0
        %1656 = vmatprep.subr.mxu0 0.0
        %1657 = vmatpush2.msra.mxu0 0.0
        %1658 = vmatprep.subr.mxu0 0.0
        %1659 = vmatpush2.msra.mxu0 0.0
        %1660 = vmatprep.subr.mxu0 0.0
        %1661 = vmatpush2.msra.mxu0 0.0
        %1662 = vmatprep.subr.mxu0 0.0
        %1663 = vmatpush2.msra.mxu0 0.0
        %1664 = vmatprep.subr.mxu0 0.0
        %1665 = vmatpush2.msra.mxu0 0.0
        %1666 = vmatprep.subr.mxu0 0.0
        %1667 = vmatpush2.msra.mxu0 0.0
        %1668 = vmatprep.subr.mxu0 0.0
        %1669 = vmatpush2.msra.mxu0 0.0
        %1670 = vmatprep.mubr.f32.mxu0 0.0
        %1671 = vmatmul.mubr.f32.gmra.mxu0 %v1598
        %v1672 = vpop.f32.mrf.mxu0
        %v1673 = vadd.f32 0.0, %v1672
        %v1674 = vpop.f32.mrf.mxu0
        %v1675 = vadd.f32 0.0, %v1674
        %1676 = vmatprep.mubr.f32.mxu0 0.0
        %1677 = vmatmul.mubr.f32.gmra.mxu0 %v1601
        %v1678 = vpop.f32.mrf.mxu0
        %v1679 = vadd.f32 0.0, %v1678
        %v1680 = vpop.f32.mrf.mxu0
        %v1681 = vadd.f32 0.0, %v1680
        %1682 = vmatprep.mubr.f32.mxu0 0.0
        %1683 = vmatmul.mubr.f32.gmra.mxu0 %v1604
        %v1684 = vpop.f32.mrf.mxu0
        %v1685 = vadd.f32 0.0, %v1684
        %v1686 = vpop.f32.mrf.mxu0
        %v1687 = vadd.f32 0.0, %v1686
        %1688 = vdwg.mxu0
        %v1689 = vadd.f32 %v1571, %v1673
        %v1690 = vadd.f32 %v1572, %v1675
        %v1691 = vadd.f32 %v1573, %v1679
        %v1692 = vadd.f32 %v1574, %v1681
        %v1693 = vadd.f32 %v1575, %v1685
        %v1694 = vadd.f32 %v1576, %v1687
        %s1695 = scalar_lea.vmem %s3, 96
        %v1696 = vld [vmem:[%s1695] sm:$0xff]
        %v1697 = vld [vmem:[%s1695 + $0x8] sm:$0xff]
        %v1698 = vld [vmem:[%s1695 + $0x10] sm:$0xff]
        %1699 = vrot.lane.b32.xlu0 %v1250, 111
        %v1700 = vpop.permute.xlu0 %1699
        %1701 = vrot.lane.b32.xlu0 %v1251, 111
        %v1702 = vpop.permute.xlu0 %1701
        %1703 = vrot.lane.b32.xlu0 %v1257, 111
        %v1704 = vpop.permute.xlu0 %1703
        %v1705 = vsel %vm740, %v1700, %v1702
        %v1706 = vsel %vm740, %v1702, %v1704
        %v1710 = vsel %vm366, %v1696, 0
        %v1713 = vsel %vm366, %v1697, 0
        %v1716 = vsel %vm366, %v1698, 0
        %1718 = vmatprep.subr.mxu0 0.0
        %1719 = vmatpush1.msra.mxu0 0.0
        %1720 = vmatprep.subr.mxu0 0.0
        %1721 = vmatpush1.msra.mxu0 0.0
        %1722 = vmatprep.subr.mxu0 0.0
        %1723 = vmatpush1.msra.mxu0 0.0
        %1724 = vmatprep.subr.mxu0 0.0
        %1725 = vmatpush1.msra.mxu0 0.0
        %1726 = vmatprep.subr.mxu0 0.0
        %1727 = vmatpush1.msra.mxu0 0.0
        %1728 = vmatprep.subr.mxu0 0.0
        %1729 = vmatpush1.msra.mxu0 0.0
        %1730 = vmatprep.subr.mxu0 0.0
        %1731 = vmatpush1.msra.mxu0 0.0
        %1732 = vmatprep.subr.mxu0 0.0
        %1733 = vmatpush1.msra.mxu0 0.0
        %1734 = vmatprep.subr.mxu0 0.0
        %1735 = vmatpush1.msra.mxu0 0.0
        %1736 = vmatprep.subr.mxu0 0.0
        %1737 = vmatpush1.msra.mxu0 0.0
        %1738 = vmatprep.subr.mxu0 0.0
        %1739 = vmatpush1.msra.mxu0 0.0
        %1740 = vmatprep.subr.mxu0 0.0
        %1741 = vmatpush1.msra.mxu0 0.0
        %1742 = vmatprep.subr.mxu0 0.0
        %1743 = vmatpush1.msra.mxu0 0.0
        %1744 = vmatprep.subr.mxu0 0.0
        %1745 = vmatpush1.msra.mxu0 0.0
        %1746 = vmatprep.subr.mxu0 0.0
        %1747 = vmatpush1.msra.mxu0 0.0
        %1748 = vmatprep.subr.mxu0 %v1706
        %1749 = vmatpush1.msra.mxu0 %v1705
        %1750 = vmatprep.subr.mxu0 0.0
        %1751 = vmatpush2.msra.mxu0 0.0
        %1752 = vmatprep.subr.mxu0 0.0
        %1753 = vmatpush2.msra.mxu0 0.0
        %1754 = vmatprep.subr.mxu0 0.0
        %1755 = vmatpush2.msra.mxu0 0.0
        %1756 = vmatprep.subr.mxu0 0.0
        %1757 = vmatpush2.msra.mxu0 0.0
        %1758 = vmatprep.subr.mxu0 0.0
        %1759 = vmatpush2.msra.mxu0 0.0
        %1760 = vmatprep.subr.mxu0 0.0
        %1761 = vmatpush2.msra.mxu0 0.0
        %1762 = vmatprep.subr.mxu0 0.0
        %1763 = vmatpush2.msra.mxu0 0.0
        %1764 = vmatprep.subr.mxu0 0.0
        %1765 = vmatpush2.msra.mxu0 0.0
        %1766 = vmatprep.subr.mxu0 0.0
        %1767 = vmatpush2.msra.mxu0 0.0
        %1768 = vmatprep.subr.mxu0 0.0
        %1769 = vmatpush2.msra.mxu0 0.0
        %1770 = vmatprep.subr.mxu0 0.0
        %1771 = vmatpush2.msra.mxu0 0.0
        %1772 = vmatprep.subr.mxu0 0.0
        %1773 = vmatpush2.msra.mxu0 0.0
        %1774 = vmatprep.subr.mxu0 0.0
        %1775 = vmatpush2.msra.mxu0 0.0
        %1776 = vmatprep.subr.mxu0 0.0
        %1777 = vmatpush2.msra.mxu0 0.0
        %1778 = vmatprep.subr.mxu0 0.0
        %1779 = vmatpush2.msra.mxu0 0.0
        %1780 = vmatprep.subr.mxu0 0.0
        %1781 = vmatpush2.msra.mxu0 0.0
        %1782 = vmatprep.mubr.f32.mxu0 0.0
        %1783 = vmatmul.mubr.f32.gmra.mxu0 %v1710
        %v1784 = vpop.f32.mrf.mxu0
        %v1785 = vadd.f32 0.0, %v1784
        %v1786 = vpop.f32.mrf.mxu0
        %v1787 = vadd.f32 0.0, %v1786
        %1788 = vmatprep.mubr.f32.mxu0 0.0
        %1789 = vmatmul.mubr.f32.gmra.mxu0 %v1713
        %v1790 = vpop.f32.mrf.mxu0
        %v1791 = vadd.f32 0.0, %v1790
        %v1792 = vpop.f32.mrf.mxu0
        %v1793 = vadd.f32 0.0, %v1792
        %1794 = vmatprep.mubr.f32.mxu0 0.0
        %1795 = vmatmul.mubr.f32.gmra.mxu0 %v1716
        %v1796 = vpop.f32.mrf.mxu0
        %v1797 = vadd.f32 0.0, %v1796
        %v1798 = vpop.f32.mrf.mxu0
        %v1799 = vadd.f32 0.0, %v1798
        %1800 = vdwg.mxu0
        %v1801 = vadd.f32 %v1689, %v1785
        %v1802 = vadd.f32 %v1690, %v1787
        %v1803 = vadd.f32 %v1691, %v1791
        %v1804 = vadd.f32 %v1692, %v1793
        %v1805 = vadd.f32 %v1693, %v1797
        %v1806 = vadd.f32 %v1694, %v1799
        %v1807 = vmul.f32 %v1250, %v822
        %v1808 = vmul.f32 %v1251, %v826
        %v1809 = vmul.f32 %v1257, %v824
        %s1810 = scalar_lea.vmem %s3, 120
        %v1811 = vld [vmem:[%s1810] sm:$0xff]
        %v1812 = vld [vmem:[%s1810 + $0x8] sm:$0xff]
        %v1813 = vld [vmem:[%s1810 + $0x10] sm:$0xff]
        %1817 = vrot.lane.b32.xlu0 %v1807, 110
        %v1818 = vpop.permute.xlu0 %1817
        %1819 = vrot.lane.b32.xlu0 %v1808, 110
        %v1820 = vpop.permute.xlu0 %1819
        %1821 = vrot.lane.b32.xlu0 %v1809, 110
        %v1822 = vpop.permute.xlu0 %1821
        %v1823 = vsel %vm844, %v1818, %v1820
        %v1824 = vsel %vm844, %v1820, %v1822
        %v1828 = vsel %vm366, %v1811, 0
        %v1831 = vsel %vm366, %v1812, 0
        %v1834 = vsel %vm366, %v1813, 0
        %1836 = vmatprep.subr.mxu0 0.0
        %1837 = vmatpush1.msra.mxu0 0.0
        %1838 = vmatprep.subr.mxu0 0.0
        %1839 = vmatpush1.msra.mxu0 0.0
        %1840 = vmatprep.subr.mxu0 0.0
        %1841 = vmatpush1.msra.mxu0 0.0
        %1842 = vmatprep.subr.mxu0 0.0
        %1843 = vmatpush1.msra.mxu0 0.0
        %1844 = vmatprep.subr.mxu0 0.0
        %1845 = vmatpush1.msra.mxu0 0.0
        %1846 = vmatprep.subr.mxu0 0.0
        %1847 = vmatpush1.msra.mxu0 0.0
        %1848 = vmatprep.subr.mxu0 0.0
        %1849 = vmatpush1.msra.mxu0 0.0
        %1850 = vmatprep.subr.mxu0 0.0
        %1851 = vmatpush1.msra.mxu0 0.0
        %1852 = vmatprep.subr.mxu0 0.0
        %1853 = vmatpush1.msra.mxu0 0.0
        %1854 = vmatprep.subr.mxu0 0.0
        %1855 = vmatpush1.msra.mxu0 0.0
        %1856 = vmatprep.subr.mxu0 0.0
        %1857 = vmatpush1.msra.mxu0 0.0
        %1858 = vmatprep.subr.mxu0 0.0
        %1859 = vmatpush1.msra.mxu0 0.0
        %1860 = vmatprep.subr.mxu0 0.0
        %1861 = vmatpush1.msra.mxu0 0.0
        %1862 = vmatprep.subr.mxu0 0.0
        %1863 = vmatpush1.msra.mxu0 0.0
        %1864 = vmatprep.subr.mxu0 0.0
        %1865 = vmatpush1.msra.mxu0 0.0
        %1866 = vmatprep.subr.mxu0 %v1824
        %1867 = vmatpush1.msra.mxu0 %v1823
        %1868 = vmatprep.subr.mxu0 0.0
        %1869 = vmatpush2.msra.mxu0 0.0
        %1870 = vmatprep.subr.mxu0 0.0
        %1871 = vmatpush2.msra.mxu0 0.0
        %1872 = vmatprep.subr.mxu0 0.0
        %1873 = vmatpush2.msra.mxu0 0.0
        %1874 = vmatprep.subr.mxu0 0.0
        %1875 = vmatpush2.msra.mxu0 0.0
        %1876 = vmatprep.subr.mxu0 0.0
        %1877 = vmatpush2.msra.mxu0 0.0
        %1878 = vmatprep.subr.mxu0 0.0
        %1879 = vmatpush2.msra.mxu0 0.0
        %1880 = vmatprep.subr.mxu0 0.0
        %1881 = vmatpush2.msra.mxu0 0.0
        %1882 = vmatprep.subr.mxu0 0.0
        %1883 = vmatpush2.msra.mxu0 0.0
        %1884 = vmatprep.subr.mxu0 0.0
        %1885 = vmatpush2.msra.mxu0 0.0
        %1886 = vmatprep.subr.mxu0 0.0
        %1887 = vmatpush2.msra.mxu0 0.0
        %1888 = vmatprep.subr.mxu0 0.0
        %1889 = vmatpush2.msra.mxu0 0.0
        %1890 = vmatprep.subr.mxu0 0.0
        %1891 = vmatpush2.msra.mxu0 0.0
        %1892 = vmatprep.subr.mxu0 0.0
        %1893 = vmatpush2.msra.mxu0 0.0
        %1894 = vmatprep.subr.mxu0 0.0
        %1895 = vmatpush2.msra.mxu0 0.0
        %1896 = vmatprep.subr.mxu0 0.0
        %1897 = vmatpush2.msra.mxu0 0.0
        %1898 = vmatprep.subr.mxu0 0.0
        %1899 = vmatpush2.msra.mxu0 0.0
        %1900 = vmatprep.mubr.f32.mxu0 0.0
        %1901 = vmatmul.mubr.f32.gmra.mxu0 %v1828
        %v1902 = vpop.f32.mrf.mxu0
        %v1903 = vadd.f32 0.0, %v1902
        %v1904 = vpop.f32.mrf.mxu0
        %v1905 = vadd.f32 0.0, %v1904
        %1906 = vmatprep.mubr.f32.mxu0 0.0
        %1907 = vmatmul.mubr.f32.gmra.mxu0 %v1831
        %v1908 = vpop.f32.mrf.mxu0
        %v1909 = vadd.f32 0.0, %v1908
        %v1910 = vpop.f32.mrf.mxu0
        %v1911 = vadd.f32 0.0, %v1910
        %1912 = vmatprep.mubr.f32.mxu0 0.0
        %1913 = vmatmul.mubr.f32.gmra.mxu0 %v1834
        %v1914 = vpop.f32.mrf.mxu0
        %v1915 = vadd.f32 0.0, %v1914
        %v1916 = vpop.f32.mrf.mxu0
        %v1917 = vadd.f32 0.0, %v1916
        %1918 = vdwg.mxu0
        %v1919 = vadd.f32 %v1801, %v1903
        %v1920 = vadd.f32 %v1802, %v1905
        %v1921 = vadd.f32 %v1803, %v1909
        %v1922 = vadd.f32 %v1804, %v1911
        %v1923 = vadd.f32 %v1805, %v1915
        %v1924 = vadd.f32 %v1806, %v1917
        %v1925 = vmul.f32 %v1250, %v926
        %v1926 = vmul.f32 %v1251, %v930
        %v1927 = vmul.f32 %v1257, %v928
        %s1928 = scalar_lea.vmem %s3, 144
        %v1929 = vld [vmem:[%s1928] sm:$0xff]
        %v1930 = vld [vmem:[%s1928 + $0x8] sm:$0xff]
        %v1931 = vld [vmem:[%s1928 + $0x10] sm:$0xff]
        %1935 = vrot.lane.b32.xlu0 %v1925, 96
        %v1936 = vpop.permute.xlu0 %1935
        %1937 = vrot.lane.b32.xlu0 %v1926, 96
        %v1938 = vpop.permute.xlu0 %1937
        %1939 = vrot.lane.b32.xlu0 %v1927, 96
        %v1940 = vpop.permute.xlu0 %1939
        %v1941 = vsel %vm948, %v1936, %v1938
        %v1942 = vsel %vm948, %v1938, %v1940
        %v1946 = vsel %vm366, %v1929, 0
        %v1949 = vsel %vm366, %v1930, 0
        %v1952 = vsel %vm366, %v1931, 0
        %1954 = vmatprep.subr.mxu0 0.0
        %1955 = vmatpush1.msra.mxu0 0.0
        %1956 = vmatprep.subr.mxu0 0.0
        %1957 = vmatpush1.msra.mxu0 0.0
        %1958 = vmatprep.subr.mxu0 0.0
        %1959 = vmatpush1.msra.mxu0 0.0
        %1960 = vmatprep.subr.mxu0 0.0
        %1961 = vmatpush1.msra.mxu0 0.0
        %1962 = vmatprep.subr.mxu0 0.0
        %1963 = vmatpush1.msra.mxu0 0.0
        %1964 = vmatprep.subr.mxu0 0.0
        %1965 = vmatpush1.msra.mxu0 0.0
        %1966 = vmatprep.subr.mxu0 0.0
        %1967 = vmatpush1.msra.mxu0 0.0
        %1968 = vmatprep.subr.mxu0 0.0
        %1969 = vmatpush1.msra.mxu0 0.0
        %1970 = vmatprep.subr.mxu0 0.0
        %1971 = vmatpush1.msra.mxu0 0.0
        %1972 = vmatprep.subr.mxu0 0.0
        %1973 = vmatpush1.msra.mxu0 0.0
        %1974 = vmatprep.subr.mxu0 0.0
        %1975 = vmatpush1.msra.mxu0 0.0
        %1976 = vmatprep.subr.mxu0 0.0
        %1977 = vmatpush1.msra.mxu0 0.0
        %1978 = vmatprep.subr.mxu0 0.0
        %1979 = vmatpush1.msra.mxu0 0.0
        %1980 = vmatprep.subr.mxu0 0.0
        %1981 = vmatpush1.msra.mxu0 0.0
        %1982 = vmatprep.subr.mxu0 0.0
        %1983 = vmatpush1.msra.mxu0 0.0
        %1984 = vmatprep.subr.mxu0 %v1942
        %1985 = vmatpush1.msra.mxu0 %v1941
        %1986 = vmatprep.subr.mxu0 0.0
        %1987 = vmatpush2.msra.mxu0 0.0
        %1988 = vmatprep.subr.mxu0 0.0
        %1989 = vmatpush2.msra.mxu0 0.0
        %1990 = vmatprep.subr.mxu0 0.0
        %1991 = vmatpush2.msra.mxu0 0.0
        %1992 = vmatprep.subr.mxu0 0.0
        %1993 = vmatpush2.msra.mxu0 0.0
        %1994 = vmatprep.subr.mxu0 0.0
        %1995 = vmatpush2.msra.mxu0 0.0
        %1996 = vmatprep.subr.mxu0 0.0
        %1997 = vmatpush2.msra.mxu0 0.0
        %1998 = vmatprep.subr.mxu0 0.0
        %1999 = vmatpush2.msra.mxu0 0.0
        %2000 = vmatprep.subr.mxu0 0.0
        %2001 = vmatpush2.msra.mxu0 0.0
        %2002 = vmatprep.subr.mxu0 0.0
        %2003 = vmatpush2.msra.mxu0 0.0
        %2004 = vmatprep.subr.mxu0 0.0
        %2005 = vmatpush2.msra.mxu0 0.0
        %2006 = vmatprep.subr.mxu0 0.0
        %2007 = vmatpush2.msra.mxu0 0.0
        %2008 = vmatprep.subr.mxu0 0.0
        %2009 = vmatpush2.msra.mxu0 0.0
        %2010 = vmatprep.subr.mxu0 0.0
        %2011 = vmatpush2.msra.mxu0 0.0
        %2012 = vmatprep.subr.mxu0 0.0
        %2013 = vmatpush2.msra.mxu0 0.0
        %2014 = vmatprep.subr.mxu0 0.0
        %2015 = vmatpush2.msra.mxu0 0.0
        %2016 = vmatprep.subr.mxu0 0.0
        %2017 = vmatpush2.msra.mxu0 0.0
        %2018 = vmatprep.mubr.f32.mxu0 0.0
        %2019 = vmatmul.mubr.f32.gmra.mxu0 %v1946
        %v2020 = vpop.f32.mrf.mxu0
        %v2021 = vadd.f32 0.0, %v2020
        %v2022 = vpop.f32.mrf.mxu0
        %v2023 = vadd.f32 0.0, %v2022
        %2024 = vmatprep.mubr.f32.mxu0 0.0
        %2025 = vmatmul.mubr.f32.gmra.mxu0 %v1949
        %v2026 = vpop.f32.mrf.mxu0
        %v2027 = vadd.f32 0.0, %v2026
        %v2028 = vpop.f32.mrf.mxu0
        %v2029 = vadd.f32 0.0, %v2028
        %2030 = vmatprep.mubr.f32.mxu0 0.0
        %2031 = vmatmul.mubr.f32.gmra.mxu0 %v1952
        %v2032 = vpop.f32.mrf.mxu0
        %v2033 = vadd.f32 0.0, %v2032
        %v2034 = vpop.f32.mrf.mxu0
        %v2035 = vadd.f32 0.0, %v2034
        %2036 = vdwg.mxu0
        %v2037 = vadd.f32 %v1919, %v2021
        %v2038 = vadd.f32 %v1920, %v2023
        %v2039 = vadd.f32 %v1921, %v2027
        %v2040 = vadd.f32 %v1922, %v2029
        %v2041 = vadd.f32 %v1923, %v2033
        %v2042 = vadd.f32 %v1924, %v2035
        %s2043 = scalar_lea.vmem %s3, 168
        %v2044 = vld [vmem:[%s2043] sm:$0xff]
        %v2045 = vld [vmem:[%s2043 + $0x8] sm:$0xff]
        %v2046 = vld [vmem:[%s2043 + $0x10] sm:$0xff]
        %2047 = vrot.lane.b32.xlu0 %v1250, 95
        %v2048 = vpop.permute.xlu0 %2047
        %2049 = vrot.lane.b32.xlu0 %v1251, 95
        %v2050 = vpop.permute.xlu0 %2049
        %2051 = vrot.lane.b32.xlu0 %v1257, 95
        %v2052 = vpop.permute.xlu0 %2051
        %v2053 = vsel %vm1037, %v2048, %v2050
        %v2054 = vsel %vm1037, %v2050, %v2052
        %v2058 = vsel %vm366, %v2044, 0
        %v2061 = vsel %vm366, %v2045, 0
        %v2064 = vsel %vm366, %v2046, 0
        %2066 = vmatprep.subr.mxu0 0.0
        %2067 = vmatpush1.msra.mxu0 0.0
        %2068 = vmatprep.subr.mxu0 0.0
        %2069 = vmatpush1.msra.mxu0 0.0
        %2070 = vmatprep.subr.mxu0 0.0
        %2071 = vmatpush1.msra.mxu0 0.0
        %2072 = vmatprep.subr.mxu0 0.0
        %2073 = vmatpush1.msra.mxu0 0.0
        %2074 = vmatprep.subr.mxu0 0.0
        %2075 = vmatpush1.msra.mxu0 0.0
        %2076 = vmatprep.subr.mxu0 0.0
        %2077 = vmatpush1.msra.mxu0 0.0
        %2078 = vmatprep.subr.mxu0 0.0
        %2079 = vmatpush1.msra.mxu0 0.0
        %2080 = vmatprep.subr.mxu0 0.0
        %2081 = vmatpush1.msra.mxu0 0.0
        %2082 = vmatprep.subr.mxu0 0.0
        %2083 = vmatpush1.msra.mxu0 0.0
        %2084 = vmatprep.subr.mxu0 0.0
        %2085 = vmatpush1.msra.mxu0 0.0
        %2086 = vmatprep.subr.mxu0 0.0
        %2087 = vmatpush1.msra.mxu0 0.0
        %2088 = vmatprep.subr.mxu0 0.0
        %2089 = vmatpush1.msra.mxu0 0.0
        %2090 = vmatprep.subr.mxu0 0.0
        %2091 = vmatpush1.msra.mxu0 0.0
        %2092 = vmatprep.subr.mxu0 0.0
        %2093 = vmatpush1.msra.mxu0 0.0
        %2094 = vmatprep.subr.mxu0 0.0
        %2095 = vmatpush1.msra.mxu0 0.0
        %2096 = vmatprep.subr.mxu0 %v2054
        %2097 = vmatpush1.msra.mxu0 %v2053
        %2098 = vmatprep.subr.mxu0 0.0
        %2099 = vmatpush2.msra.mxu0 0.0
        %2100 = vmatprep.subr.mxu0 0.0
        %2101 = vmatpush2.msra.mxu0 0.0
        %2102 = vmatprep.subr.mxu0 0.0
        %2103 = vmatpush2.msra.mxu0 0.0
        %2104 = vmatprep.subr.mxu0 0.0
        %2105 = vmatpush2.msra.mxu0 0.0
        %2106 = vmatprep.subr.mxu0 0.0
        %2107 = vmatpush2.msra.mxu0 0.0
        %2108 = vmatprep.subr.mxu0 0.0
        %2109 = vmatpush2.msra.mxu0 0.0
        %2110 = vmatprep.subr.mxu0 0.0
        %2111 = vmatpush2.msra.mxu0 0.0
        %2112 = vmatprep.subr.mxu0 0.0
        %2113 = vmatpush2.msra.mxu0 0.0
        %2114 = vmatprep.subr.mxu0 0.0
        %2115 = vmatpush2.msra.mxu0 0.0
        %2116 = vmatprep.subr.mxu0 0.0
        %2117 = vmatpush2.msra.mxu0 0.0
        %2118 = vmatprep.subr.mxu0 0.0
        %2119 = vmatpush2.msra.mxu0 0.0
        %2120 = vmatprep.subr.mxu0 0.0
        %2121 = vmatpush2.msra.mxu0 0.0
        %2122 = vmatprep.subr.mxu0 0.0
        %2123 = vmatpush2.msra.mxu0 0.0
        %2124 = vmatprep.subr.mxu0 0.0
        %2125 = vmatpush2.msra.mxu0 0.0
        %2126 = vmatprep.subr.mxu0 0.0
        %2127 = vmatpush2.msra.mxu0 0.0
        %2128 = vmatprep.subr.mxu0 0.0
        %2129 = vmatpush2.msra.mxu0 0.0
        %2130 = vmatprep.mubr.f32.mxu0 0.0
        %2131 = vmatmul.mubr.f32.gmra.mxu0 %v2058
        %v2132 = vpop.f32.mrf.mxu0
        %v2133 = vadd.f32 0.0, %v2132
        %v2134 = vpop.f32.mrf.mxu0
        %v2135 = vadd.f32 0.0, %v2134
        %2136 = vmatprep.mubr.f32.mxu0 0.0
        %2137 = vmatmul.mubr.f32.gmra.mxu0 %v2061
        %v2138 = vpop.f32.mrf.mxu0
        %v2139 = vadd.f32 0.0, %v2138
        %v2140 = vpop.f32.mrf.mxu0
        %v2141 = vadd.f32 0.0, %v2140
        %2142 = vmatprep.mubr.f32.mxu0 0.0
        %2143 = vmatmul.mubr.f32.gmra.mxu0 %v2064
        %v2144 = vpop.f32.mrf.mxu0
        %v2145 = vadd.f32 0.0, %v2144
        %v2146 = vpop.f32.mrf.mxu0
        %v2147 = vadd.f32 0.0, %v2146
        %2148 = vdwg.mxu0
        %v2149 = vadd.f32 %v2037, %v2133
        %v2150 = vadd.f32 %v2038, %v2135
        %v2151 = vadd.f32 %v2039, %v2139
        %v2152 = vadd.f32 %v2040, %v2141
        %v2153 = vadd.f32 %v2041, %v2145
        %v2154 = vadd.f32 %v2042, %v2147
        %v2155 = vmul.f32 %v1250, %v1119
        %v2156 = vmul.f32 %v1251, %v1123
        %v2157 = vmul.f32 %v1257, %v1121
        %s2158 = scalar_lea.vmem %s3, 192
        %v2159 = vld [vmem:[%s2158] sm:$0xff]
        %v2160 = vld [vmem:[%s2158 + $0x8] sm:$0xff]
        %v2161 = vld [vmem:[%s2158 + $0x10] sm:$0xff]
        %2165 = vrot.lane.b32.xlu0 %v2155, 94
        %v2166 = vpop.permute.xlu0 %2165
        %2167 = vrot.lane.b32.xlu0 %v2156, 94
        %v2168 = vpop.permute.xlu0 %2167
        %2169 = vrot.lane.b32.xlu0 %v2157, 94
        %v2170 = vpop.permute.xlu0 %2169
        %v2171 = vsel %vm1141, %v2166, %v2168
        %v2172 = vsel %vm1141, %v2168, %v2170
        %v2176 = vsel %vm366, %v2159, 0
        %v2179 = vsel %vm366, %v2160, 0
        %v2182 = vsel %vm366, %v2161, 0
        %2184 = vmatprep.subr.mxu0 0.0
        %2185 = vmatpush1.msra.mxu0 0.0
        %2186 = vmatprep.subr.mxu0 0.0
        %2187 = vmatpush1.msra.mxu0 0.0
        %2188 = vmatprep.subr.mxu0 0.0
        %2189 = vmatpush1.msra.mxu0 0.0
        %2190 = vmatprep.subr.mxu0 0.0
        %2191 = vmatpush1.msra.mxu0 0.0
        %2192 = vmatprep.subr.mxu0 0.0
        %2193 = vmatpush1.msra.mxu0 0.0
        %2194 = vmatprep.subr.mxu0 0.0
        %2195 = vmatpush1.msra.mxu0 0.0
        %2196 = vmatprep.subr.mxu0 0.0
        %2197 = vmatpush1.msra.mxu0 0.0
        %2198 = vmatprep.subr.mxu0 0.0
        %2199 = vmatpush1.msra.mxu0 0.0
        %2200 = vmatprep.subr.mxu0 0.0
        %2201 = vmatpush1.msra.mxu0 0.0
        %2202 = vmatprep.subr.mxu0 0.0
        %2203 = vmatpush1.msra.mxu0 0.0
        %2204 = vmatprep.subr.mxu0 0.0
        %2205 = vmatpush1.msra.mxu0 0.0
        %2206 = vmatprep.subr.mxu0 0.0
        %2207 = vmatpush1.msra.mxu0 0.0
        %2208 = vmatprep.subr.mxu0 0.0
        %2209 = vmatpush1.msra.mxu0 0.0
        %2210 = vmatprep.subr.mxu0 0.0
        %2211 = vmatpush1.msra.mxu0 0.0
        %2212 = vmatprep.subr.mxu0 0.0
        %2213 = vmatpush1.msra.mxu0 0.0
        %2214 = vmatprep.subr.mxu0 %v2172
        %2215 = vmatpush1.msra.mxu0 %v2171
        %2216 = vmatprep.subr.mxu0 0.0
        %2217 = vmatpush2.msra.mxu0 0.0
        %2218 = vmatprep.subr.mxu0 0.0
        %2219 = vmatpush2.msra.mxu0 0.0
        %2220 = vmatprep.subr.mxu0 0.0
        %2221 = vmatpush2.msra.mxu0 0.0
        %2222 = vmatprep.subr.mxu0 0.0
        %2223 = vmatpush2.msra.mxu0 0.0
        %2224 = vmatprep.subr.mxu0 0.0
        %2225 = vmatpush2.msra.mxu0 0.0
        %2226 = vmatprep.subr.mxu0 0.0
        %2227 = vmatpush2.msra.mxu0 0.0
        %2228 = vmatprep.subr.mxu0 0.0
        %2229 = vmatpush2.msra.mxu0 0.0
        %2230 = vmatprep.subr.mxu0 0.0
        %2231 = vmatpush2.msra.mxu0 0.0
        %2232 = vmatprep.subr.mxu0 0.0
        %2233 = vmatpush2.msra.mxu0 0.0
        %2234 = vmatprep.subr.mxu0 0.0
        %2235 = vmatpush2.msra.mxu0 0.0
        %2236 = vmatprep.subr.mxu0 0.0
        %2237 = vmatpush2.msra.mxu0 0.0
        %2238 = vmatprep.subr.mxu0 0.0
        %2239 = vmatpush2.msra.mxu0 0.0
        %2240 = vmatprep.subr.mxu0 0.0
        %2241 = vmatpush2.msra.mxu0 0.0
        %2242 = vmatprep.subr.mxu0 0.0
        %2243 = vmatpush2.msra.mxu0 0.0
        %2244 = vmatprep.subr.mxu0 0.0
        %2245 = vmatpush2.msra.mxu0 0.0
        %2246 = vmatprep.subr.mxu0 0.0
        %2247 = vmatpush2.msra.mxu0 0.0
        %2248 = vmatprep.mubr.f32.mxu0 0.0
        %2249 = vmatmul.mubr.f32.gmra.mxu0 %v2176
        %v2250 = vpop.f32.mrf.mxu0
        %v2251 = vadd.f32 0.0, %v2250
        %v2252 = vpop.f32.mrf.mxu0
        %v2253 = vadd.f32 0.0, %v2252
        %2254 = vmatprep.mubr.f32.mxu0 0.0
        %2255 = vmatmul.mubr.f32.gmra.mxu0 %v2179
        %v2256 = vpop.f32.mrf.mxu0
        %v2257 = vadd.f32 0.0, %v2256
        %v2258 = vpop.f32.mrf.mxu0
        %v2259 = vadd.f32 0.0, %v2258
        %2260 = vmatprep.mubr.f32.mxu0 0.0
        %2261 = vmatmul.mubr.f32.gmra.mxu0 %v2182
        %v2262 = vpop.f32.mrf.mxu0
        %v2263 = vadd.f32 0.0, %v2262
        %v2264 = vpop.f32.mrf.mxu0
        %v2265 = vadd.f32 0.0, %v2264
        %2266 = vdwg.mxu0
        %v2267 = vadd.f32 %v2149, %v2251
        %v2268 = vadd.f32 %v2150, %v2253
        %v2269 = vadd.f32 %v2151, %v2257
        %v2270 = vadd.f32 %v2152, %v2259
        %v2271 = vadd.f32 %v2153, %v2263
        %v2272 = vadd.f32 %v2154, %v2265
        %v2273 = vld [vmem:[%s4] sm:$0xff]
        %v2274 = vld [vmem:[%s4 + $0x8] sm:$0xff]
        %v2275 = vld [vmem:[%s4 + $0x10] sm:$0xff]
        %2277 = vset.pattern.permute.xlu0 0
        %2278 = vperm.xlu0 %2277, %v2273
        %v2279 = vpop.permute.xlu0 %2278
        %2282 = vset.pattern.permute.xlu0 0
        %2283 = vperm.xlu0 %2282, %v2274
        %v2284 = vpop.permute.xlu0 %2283
        %2287 = vset.pattern.permute.xlu0 0
        %2288 = vperm.xlu0 %2287, %v2275
        %v2289 = vpop.permute.xlu0 %2288
        %v2291 = vadd.f32 %v2267, %v2279
        %v2292 = vadd.f32 %v2268, %v2279
        %v2293 = vadd.f32 %v2269, %v2284
        %v2294 = vadd.f32 %v2270, %v2284
        %v2295 = vadd.f32 %v2271, %v2289
        %v2296 = vadd.f32 %v2272, %v2289
        %v2297 = vld [vmem:[%s5] sm:$0xff]
        %v2298 = vld [vmem:[%s6] sm:$0xff]
        %2300 = vset.pattern.permute.xlu0 0
        %2301 = vperm.xlu0 %2300, %v2298
        %v2302 = vpop.permute.xlu0 %2301
        %vm2304 = vcmask 195584
        %v2306 = vsel %vm2304, %v2297, 0
        %2308 = vmatprep.subr.mxu0 0.0
        %2309 = vmatpush1.msra.mxu0 0.0
        %2310 = vmatprep.subr.mxu0 0.0
        %2311 = vmatpush1.msra.mxu0 0.0
        %2312 = vmatprep.subr.mxu0 0.0
        %2313 = vmatpush1.msra.mxu0 0.0
        %2314 = vmatprep.subr.mxu0 0.0
        %2315 = vmatpush1.msra.mxu0 0.0
        %2316 = vmatprep.subr.mxu0 0.0
        %2317 = vmatpush1.msra.mxu0 0.0
        %2318 = vmatprep.subr.mxu0 0.0
        %2319 = vmatpush1.msra.mxu0 0.0
        %2320 = vmatprep.subr.mxu0 0.0
        %2321 = vmatpush1.msra.mxu0 0.0
        %2322 = vmatprep.subr.mxu0 0.0
        %2323 = vmatpush1.msra.mxu0 0.0
        %2324 = vmatprep.subr.mxu0 0.0
        %2325 = vmatpush1.msra.mxu0 0.0
        %2326 = vmatprep.subr.mxu0 0.0
        %2327 = vmatpush1.msra.mxu0 0.0
        %2328 = vmatprep.subr.mxu0 0.0
        %2329 = vmatpush1.msra.mxu0 0.0
        %2330 = vmatprep.subr.mxu0 0.0
        %2331 = vmatpush1.msra.mxu0 0.0
        %2332 = vmatprep.subr.mxu0 0.0
        %2333 = vmatpush1.msra.mxu0 0.0
        %2334 = vmatprep.subr.mxu0 %v2296
        %2335 = vmatpush1.msra.mxu0 %v2295
        %2336 = vmatprep.subr.mxu0 %v2294
        %2337 = vmatpush1.msra.mxu0 %v2293
        %2338 = vmatprep.subr.mxu0 %v2292
        %2339 = vmatpush1.msra.mxu0 %v2291
        %2340 = vmatprep.subr.mxu0 0.0
        %2341 = vmatpush2.msra.mxu0 0.0
        %2342 = vmatprep.subr.mxu0 0.0
        %2343 = vmatpush2.msra.mxu0 0.0
        %2344 = vmatprep.subr.mxu0 0.0
        %2345 = vmatpush2.msra.mxu0 0.0
        %2346 = vmatprep.subr.mxu0 0.0
        %2347 = vmatpush2.msra.mxu0 0.0
        %2348 = vmatprep.subr.mxu0 0.0
        %2349 = vmatpush2.msra.mxu0 0.0
        %2350 = vmatprep.subr.mxu0 0.0
        %2351 = vmatpush2.msra.mxu0 0.0
        %2352 = vmatprep.subr.mxu0 0.0
        %2353 = vmatpush2.msra.mxu0 0.0
        %2354 = vmatprep.subr.mxu0 0.0
        %2355 = vmatpush2.msra.mxu0 0.0
        %2356 = vmatprep.subr.mxu0 0.0
        %2357 = vmatpush2.msra.mxu0 0.0
        %2358 = vmatprep.subr.mxu0 0.0
        %2359 = vmatpush2.msra.mxu0 0.0
        %2360 = vmatprep.subr.mxu0 0.0
        %2361 = vmatpush2.msra.mxu0 0.0
        %2362 = vmatprep.subr.mxu0 0.0
        %2363 = vmatpush2.msra.mxu0 0.0
        %2364 = vmatprep.subr.mxu0 0.0
        %2365 = vmatpush2.msra.mxu0 0.0
        %2366 = vmatprep.subr.mxu0 0.0
        %2367 = vmatpush2.msra.mxu0 0.0
        %2368 = vmatprep.subr.mxu0 0.0
        %2369 = vmatpush2.msra.mxu0 0.0
        %2370 = vmatprep.subr.mxu0 0.0
        %2371 = vmatpush2.msra.mxu0 0.0
        %2372 = vmatprep.mubr.f32.mxu0 0.0
        %2373 = vmatmul.mubr.f32.gmra.mxu0 %v2306
        %v2374 = vpop.f32.mrf.mxu0
        %v2375 = vadd.f32 %v2302, %v2374
        %v2376 = vpop.f32.mrf.mxu0
        %v2377 = vadd.f32 %v2302, %v2376
        %2378 = vdwg.mxu0
        %v2379 = vld [vmem:[%s330] sm:$0xff]
        %v2380 = vld [vmem:[%s330 + $0x8] sm:$0xff]
        %v2381 = vld [vmem:[%s330 + $0x10] sm:$0xff]
        %2385 = vrot.lane.b32.xlu0 %v2379, 111
        %v2386 = vpop.permute.xlu0 %2385
        %2387 = vrot.lane.b32.xlu0 %v2380, 111
        %v2388 = vpop.permute.xlu0 %2387
        %2389 = vrot.lane.b32.xlu0 %v2381, 111
        %v2390 = vpop.permute.xlu0 %2389
        %v2391 = vsel %vm740, %v2386, %v2388
        %v2392 = vsel %vm740, %v2388, %v2390
        %v2395 = vadd.f32 %v2375, %v2391
        %v2396 = vadd.f32 %v2377, %v2392
        %v2397 = vmax.f32 %v2395, 0.0
        %v2398 = vmax.f32 %v2396, 0.0
        %2399 = vst [vmem:[%s325] sm:$0xff] %v2397
        %2400 = vst [vmem:[%s325 + $0x8] sm:$0xff] %v2398
        %s2401 = sand.u32 %s225, 1
        %s2402 = scalar_lea.sflag [#allocation4], %s2401
        %s2403 = sand.u32 %s225, 1
        %s2404 = smul.addr %s2403, 16
        %s2405 = scalar_lea.vmem [#allocation3], %s2404
        // Predicated region
        $region57: #{tpu_custom_call.1} parent=55 // pred_check
          %p2406 = pneg %p235
        $region58: #{tpu_custom_call.1} parent=55 // pred_check_branch
          %2408 = sbr.rel (%p2406) target = $region60
        $region59: #{tpu_custom_call.1} parent=55 // pred_region
          %s2410 = ssub.s32 256, 256
          %2411 = vsyncadd %s2402, %s2410
          %s2412 = smul.addr %s23, 2
          %s2413 = smul.addr %s2412, 128
          %s2414 = scalar_lea.hbm %s9, %s2413
          %s2416 = sshll.u32 %s2405, 4
          %s2417 = int_to_ptr.vmem [resolvable:$true] %s2416
          %2419 = dma.vmem_to_hbm [thread:$0]  %s2417, 256, %s2414, %s2402
        $region60: #{tpu_custom_call.1} parent=55 // pred_fallthru
          _
      $region56: #{tpu_custom_call.1} parent=5 // pred_fallthru
        _
      %p2420 = scmp.le.s32.totalorder 2, %s18
      // Predicated region
      $region61: #{tpu_custom_call.1} parent=5 // pred_check
        %p2421 = pneg %p2420
      $region62: #{tpu_custom_call.1} parent=5 // pred_check_branch
        %2423 = sbr.rel (%p2421) target = $region64
      $region63: #{tpu_custom_call.1} parent=5 // pred_region
        %s2424 = ssub.s32 %s18, 2
        // Predicated region
        $region65: #{tpu_custom_call.1} parent=63 // pred_check
          %p2425 = pneg %p241
        $region66: #{tpu_custom_call.1} parent=63 // pred_check_branch
          %2427 = sbr.rel (%p2425) target = $region68
        $region67: #{tpu_custom_call.1} parent=63 // pred_region
          %s2428 = sand.u32 %s226, 1
          %s2429 = scalar_lea.sflag [#allocation4], %s2428
          %s2430 = sand.u32 %s226, 1
          %s2431 = smul.addr %s2430, 16
          %s2432 = scalar_lea.vmem [#allocation3], %s2431
          %2433 = dma.done %s2429, 256
        $region68: #{tpu_custom_call.1} parent=63 // pred_fallthru
          _
      $region64: #{tpu_custom_call.1} parent=5 // pred_fallthru
        _
    $region6: #{tpu_custom_call.1} parent=1 // loop_footer
      %s22 = sadd.s32 1, %s18
    $region7: #{tpu_custom_call.1} parent=1 // loop_footer_branch
      %17 = sbr.rel target = $region3
    $region8: #{tpu_custom_call.1} parent=1 // loop_exit
      _
    %2434 = vsyncpa [#allocation4], 1
    %s2435 = scalar_lea.sflag [#allocation4], 1
    %2436 = vsyncpa %s2435, 1

</llo_original>
